<compile_context>
chip_gen: v7x
topology: tpu7x:2x2x1
jax: 0.10.0
libtpu: 0.0.40
codegen_flags: <defaults>
</compile_context>

<pallas_src>
import functools
import math

import jax
import jax.numpy as jnp
from jax.experimental import pallas as pl
from jax.experimental.pallas import tpu as pltpu


def _cdiv(a, b):
    return -(-a // b)


def fused_attention_kernel(x_ref, wbig_ref, bshift_ref, g_ref, bcast_ref,
                           kc_ref, bc_ref, corr_ref, o_ref,
                           acc_ref, wei_ref, *, inv_n):
    phase = pl.program_id(0)   # 0: reduction over all tiles, 1: scale & write out
    i = pl.program_id(1)       # tile index

    @pl.when(jnp.logical_and(phase == 0, i == 0))
    def _init():
        acc_ref[...] = jnp.zeros_like(acc_ref)

    @pl.when(phase == 0)
    def _reduce():
        t = jnp.tanh(x_ref[...])                                            # (tm, 384)
        y = jnp.dot(t, wbig_ref[...],
                    preferred_element_type=jnp.float32) + bshift_ref[...]   # (tm, 384)
        e = jnp.exp(y)                                                      # (0, 1]
        # group (per-position) sums of exp over the 12 features, then exact divide
        s = jnp.dot(e, g_ref[...], preferred_element_type=jnp.float32)      # (tm, 32)
        inv_b = jnp.dot(1.0 / s, bcast_ref[...],
                        preferred_element_type=jnp.float32)                 # (tm, 384)
        p = e * inv_b                                                       # softmax probs
        acc_ref[...] += jnp.sum(p, axis=0, keepdims=True)                   # (1, 384)

    @pl.when(jnp.logical_and(phase == 1, i == 0))
    def _finalize_wei():
        # Fold the 32 position slots into per-feature totals, broadcast back to
        # all 384 lanes, remove the padded positions' known softmax(b)
        # contribution, and apply the 1/N of mean(0).mean(0).
        per_feat = jnp.dot(acc_ref[...], kc_ref[...],
                           preferred_element_type=jnp.float32)              # (1, 12)
        tot = jnp.dot(per_feat, bc_ref[...],
                      preferred_element_type=jnp.float32)                   # (1, 384)
        wei_ref[...] = (tot - corr_ref[...]) * inv_n

    @pl.when(phase == 1)
    def _scale():
        o_ref[...] = x_ref[...] * wei_ref[...]                              # lane-dense


def attention_layer_forward(x, weight, bias, *, tile_m_max=2048):
    """x: (B, S, D) float32; weight: (D, D) PyTorch Linear layout; bias: (D,)."""
    B, S, D = x.shape
    N = B * S

    lanes = D * 128 // math.gcd(D, 128)        # 384 for D=12 (lcm(D, 128))
    groups = lanes // D                        # 32 positions per flat row

    # ---- flat, lane-dense (M, 384) view of x (contiguous pad only; no transpose)
    m_needed = _cdiv(N * D, lanes)
    if m_needed <= tile_m_max:
        tile_m = max(int(m_needed), 1)
        m_pad = tile_m
    else:
        tile_m = int(tile_m_max)
        m_pad = _cdiv(m_needed, tile_m) * tile_m
    n_tiles = m_pad // tile_m

    flat = x.reshape(N * D).astype(jnp.float32)
    total = m_pad * lanes
    if total != N * D:
        flat = jnp.pad(flat, (0, total - N * D))
    x_flat = flat.reshape(m_pad, lanes)

    # ---- small constant structure matrices (built once, resident in VMEM)
    w32 = weight.astype(jnp.float32)
    b32 = bias.astype(jnp.float32)
    eye_g = jnp.eye(groups, dtype=jnp.float32)
    eye_d = jnp.eye(D, dtype=jnp.float32)

    wbig = jnp.kron(eye_g, w32.T)                                   # (384, 384)
    shift = jnp.max(jnp.sum(jnp.abs(w32), axis=1) + jnp.abs(b32))   # scalar bound on y
    bshift = (jnp.tile(b32, groups) - shift).reshape(1, lanes)      # (1, 384)
    g_mat = jnp.kron(eye_g, jnp.ones((D, 1), jnp.float32))          # (384, 32)
    bcast = jnp.kron(eye_g, jnp.ones((1, D), jnp.float32))          # (32, 384)
    kc = jnp.kron(jnp.ones((groups, 1), jnp.float32), eye_d)        # (384, 12)
    bc = jnp.kron(jnp.ones((1, groups), jnp.float32), eye_d)        # (12, 384)

    # Padded positions (x = 0) each contribute exactly softmax(b); subtract once.
    n_padpos = m_pad * groups - N
    corr = (float(n_padpos) * jnp.tile(jax.nn.softmax(b32), groups)).reshape(1, lanes)

    kernel = functools.partial(fused_attention_kernel, inv_n=1.0 / N)
    const = lambda p, i: (0, 0)

    out_flat = pl.pallas_call(
        kernel,
        out_shape=jax.ShapeDtypeStruct((m_pad, lanes), jnp.float32),
        grid=(2, n_tiles),
        in_specs=[
            pl.BlockSpec((tile_m, lanes), lambda p, i: (i, 0)),  # x tiles (both phases)
            pl.BlockSpec((lanes, lanes), const),                 # Wbig
            pl.BlockSpec((1, lanes), const),                     # bias - shift (tiled)
            pl.BlockSpec((lanes, groups), const),                # G  : group sums
            pl.BlockSpec((groups, lanes), const),                # B  : group broadcast
            pl.BlockSpec((lanes, D), const),                     # Kc : slots -> features
            pl.BlockSpec((D, lanes), const),                     # Bc : features -> slots
            pl.BlockSpec((1, lanes), const),                     # padding correction
        ],
        # During phase 0 the output stays pinned to block 0 and is never flushed;
        # phase 1 writes real data tile by tile.
        out_specs=pl.BlockSpec((tile_m, lanes), lambda p, i: (i * p, 0)),
        scratch_shapes=[
            pltpu.VMEM((1, lanes), jnp.float32),   # acc: running column sums of p
            pltpu.VMEM((1, lanes), jnp.float32),   # wei broadcast to all 32 slots
        ],
        compiler_params=pltpu.CompilerParams(
            dimension_semantics=("arbitrary", "arbitrary"),
            vmem_limit_bytes=32 * 1024 * 1024,
        ),
        cost_estimate=pl.CostEstimate(
            flops=int(m_pad * (2 * lanes * lanes + 4 * lanes * groups + 6 * lanes)),
            transcendentals=int(2 * m_pad * lanes),
            bytes_accessed=int(3 * m_pad * lanes * 4 + lanes * lanes * 4),
        ),
    )(x_flat, wbig, bshift, g_mat, bcast, kc, bc, corr)

    return out_flat.reshape(-1)[: N * D].reshape(B, S, D).astype(x.dtype)


def reference_forward(x, weight, bias):
    t = jnp.tanh(x)
    y = jnp.einsum("bsd,ed->bse", t, weight,
                   precision=jax.lax.Precision.HIGHEST) + bias
    p = jax.nn.softmax(y, axis=2)
    wei = p.mean(0).mean(0)  # (D,)
    return x * wei


if __name__ == "__main__":
    key = jax.random.PRNGKey(0)
    kx, kw, kb, kx2 = jax.random.split(key, 4)

    D = 12
    bound = 1.0 / (D ** 0.5)
    weight = jax.random.uniform(kw, (D, D), minval=-bound, maxval=bound,
                                dtype=jnp.float32)
    bias = jax.random.uniform(kb, (D,), minval=-bound, maxval=bound,
                              dtype=jnp.float32)

    # Small shape consistent with the module (also exercises the zero-pad path).
    B, S = 2, 8
    x = jax.random.normal(kx, (B, S, D), dtype=jnp.float32)
    out = jax.block_until_ready(attention_layer_forward(x, weight, bias))
    ref = reference_forward(x, weight, bias)
    assert out.shape == (B, S, D)
    # Exact divide is used for the softmax denominator; observed error is
    # typically ~1e-6.  The tolerance below is kept as safety margin for MXU
    # default-precision f32 pass behaviour across TPU generations.
    assert jnp.allclose(out, ref, atol=1e-3, rtol=1e-3), (
        f"mismatch vs reference, max abs err = {jnp.max(jnp.abs(out - ref))}")

    # A second shape with a tiny tile cap to exercise the multi-tile fused
    # pipeline (accumulate over 4 tiles -> finalize -> per-tile scale).
    B2, S2 = 4, 256
    x2 = jax.random.normal(kx2, (B2, S2, D), dtype=jnp.float32)
    out2 = jax.block_until_ready(
        attention_layer_forward(x2, weight, bias, tile_m_max=8))
    ref2 = reference_forward(x2, weight, bias)
    assert jnp.allclose(out2, ref2, atol=1e-3, rtol=1e-3), (
        f"mismatch vs reference (multi-tile), "
        f"max abs err = {jnp.max(jnp.abs(out2 - ref2))}")

    print("KERNEL_OK")
</pallas_src>

<mosaic_0001>
module attributes {stable_mosaic.version = 11 : i64} {
  func.func @fused_attention_kernel(%arg0: i32, %arg1: i32, %arg2: memref<1x384xf32, #tpu.memory_space<vmem>>, %arg3: memref<384x384xf32, #tpu.memory_space<vmem>>, %arg4: memref<1x384xf32, #tpu.memory_space<vmem>>, %arg5: memref<384x32xf32, #tpu.memory_space<vmem>>, %arg6: memref<32x384xf32, #tpu.memory_space<vmem>>, %arg7: memref<384x12xf32, #tpu.memory_space<vmem>>, %arg8: memref<12x384xf32, #tpu.memory_space<vmem>>, %arg9: memref<1x384xf32, #tpu.memory_space<vmem>>, %arg10: memref<1x384xf32, #tpu.memory_space<vmem>>, %arg11: memref<1x384xf32, #tpu.memory_space<vmem>>, %arg12: memref<1x384xf32, #tpu.memory_space<vmem>>) attributes {dimension_semantics = [#tpu.dimension_semantics<arbitrary>, #tpu.dimension_semantics<arbitrary>], iteration_bounds = array<i64: 2, 1>, scalar_prefetch = 0 : i64, scratch_operands = 2 : i64, tpu.core_type = #tpu.core_type<tc>, window_params = [{transform_indices = @transform_0, window_bounds = array<i64: 1, 384>}, {pipeline_mode = #tpu.pipeline_mode<synchronous>, transform_indices = @transform_1, window_bounds = array<i64: 384, 384>}, {pipeline_mode = #tpu.pipeline_mode<synchronous>, transform_indices = @transform_2, window_bounds = array<i64: 1, 384>}, {pipeline_mode = #tpu.pipeline_mode<synchronous>, transform_indices = @transform_3, window_bounds = array<i64: 384, 32>}, {pipeline_mode = #tpu.pipeline_mode<synchronous>, transform_indices = @transform_4, window_bounds = array<i64: 32, 384>}, {pipeline_mode = #tpu.pipeline_mode<synchronous>, transform_indices = @transform_5, window_bounds = array<i64: 384, 12>}, {pipeline_mode = #tpu.pipeline_mode<synchronous>, transform_indices = @transform_6, window_bounds = array<i64: 12, 384>}, {pipeline_mode = #tpu.pipeline_mode<synchronous>, transform_indices = @transform_7, window_bounds = array<i64: 1, 384>}, {transform_indices = @transform_8, window_bounds = array<i64: 1, 384>}]} {
    %c0_i32 = arith.constant 0 : i32
    %0 = arith.cmpi eq, %arg0, %c0_i32 : i32
    %c0_i32_0 = arith.constant 0 : i32
    %1 = arith.cmpi eq, %arg1, %c0_i32_0 : i32
    %2 = arith.andi %0, %1 : i1
    %3 = arith.extui %2 : i1 to i32
    %c0_i32_1 = arith.constant 0 : i32
    %4 = arith.cmpi ne, %3, %c0_i32_1 : i32
    scf.if %4 {
      %cst = arith.constant 0.000000e+00 : f32
      %16 = vector.broadcast %cst : f32 to vector<1x384xf32>
      %c0 = arith.constant 0 : index
      %c0_8 = arith.constant 0 : index
      %17 = vector.load %arg11[%c0, %c0_8] : memref<1x384xf32, #tpu.memory_space<vmem>>, vector<1x384xf32>
      tpu.vector_store %arg11[%c0, %c0_8], %16 {strides = array<i32>} : memref<1x384xf32, #tpu.memory_space<vmem>>, vector<1x384xf32>,
    } else {
    }
    %c0_i32_2 = arith.constant 0 : i32
    %5 = arith.cmpi eq, %arg0, %c0_i32_2 : i32
    %6 = arith.extui %5 : i1 to i32
    %c0_i32_3 = arith.constant 0 : i32
    %7 = arith.cmpi ne, %6, %c0_i32_3 : i32
    scf.if %7 {
      %c0 = arith.constant 0 : index
      %c0_8 = arith.constant 0 : index
      %16 = vector.load %arg2[%c0, %c0_8] : memref<1x384xf32, #tpu.memory_space<vmem>>, vector<1x384xf32>
      %17 = math.tanh %16 : vector<1x384xf32>
      %c0_9 = arith.constant 0 : index
      %c0_10 = arith.constant 0 : index
      %18 = vector.load %arg3[%c0_9, %c0_10] : memref<384x384xf32, #tpu.memory_space<vmem>>, vector<384x384xf32>
      %cst = arith.constant dense<0.000000e+00> : vector<1x384xf32>
      %19 = tpu.matmul %17, %18, %cst {dimension_numbers = #tpu.dot_dimension_numbers<[1], [0], [0], [1], [0, 0, 1, 1], [], []>} : vector<1x384xf32>, vector<384x384xf32>, vector<1x384xf32> -> vector<1x384xf32>
      %c0_11 = arith.constant 0 : index
      %c0_12 = arith.constant 0 : index
      %20 = vector.load %arg4[%c0_11, %c0_12] : memref<1x384xf32, #tpu.memory_space<vmem>>, vector<1x384xf32>
      %21 = arith.addf %19, %20 : vector<1x384xf32>
      %22 = math.exp %21 : vector<1x384xf32>
      %c0_13 = arith.constant 0 : index
      %c0_14 = arith.constant 0 : index
      %23 = vector.load %arg5[%c0_13, %c0_14] : memref<384x32xf32, #tpu.memory_space<vmem>>, vector<384x32xf32>
      %cst_15 = arith.constant dense<0.000000e+00> : vector<1x32xf32>
      %24 = tpu.matmul %22, %23, %cst_15 {dimension_numbers = #tpu.dot_dimension_numbers<[1], [0], [0], [1], [0, 0, 1, 1], [], []>} : vector<1x384xf32>, vector<384x32xf32>, vector<1x32xf32> -> vector<1x32xf32>
      %cst_16 = arith.constant 1.000000e+00 : f32
      %25 = vector.broadcast %cst_16 : f32 to vector<1x32xf32>
      %26 = arith.divf %25, %24 : vector<1x32xf32>
      %c0_17 = arith.constant 0 : index
      %c0_18 = arith.constant 0 : index
      %27 = vector.load %arg6[%c0_17, %c0_18] : memref<32x384xf32, #tpu.memory_space<vmem>>, vector<32x384xf32>
      %cst_19 = arith.constant dense<0.000000e+00> : vector<1x384xf32>
      %28 = tpu.matmul %26, %27, %cst_19 {dimension_numbers = #tpu.dot_dimension_numbers<[1], [0], [0], [1], [0, 0, 1, 1], [], []>} : vector<1x32xf32>, vector<32x384xf32>, vector<1x384xf32> -> vector<1x384xf32>
      %29 = arith.mulf %22, %28 : vector<1x384xf32>
      %c0_20 = arith.constant 0 : index
      %c0_21 = arith.constant 0 : index
      %30 = vector.load %arg11[%c0_20, %c0_21] : memref<1x384xf32, #tpu.memory_space<vmem>>, vector<1x384xf32>
      %cst_22 = arith.constant dense<0.000000e+00> : vector<384xf32>
      %31 = vector.multi_reduction <add>, %29, %cst_22 [0] : vector<1x384xf32> to vector<384xf32>
      %32 = vector.shape_cast %31 : vector<384xf32> to vector<1x384xf32>
      %33 = arith.addf %30, %32 : vector<1x384xf32>
      %c0_23 = arith.constant 0 : index
      %c0_24 = arith.constant 0 : index
      %34 = vector.load %arg11[%c0_23, %c0_24] : memref<1x384xf32, #tpu.memory_space<vmem>>, vector<1x384xf32>
      tpu.vector_store %arg11[%c0_23, %c0_24], %33 {strides = array<i32>} : memref<1x384xf32, #tpu.memory_space<vmem>>, vector<1x384xf32>,
    } else {
    }
    %c1_i32 = arith.constant 1 : i32
    %8 = arith.cmpi eq, %arg0, %c1_i32 : i32
    %c0_i32_4 = arith.constant 0 : i32
    %9 = arith.cmpi eq, %arg1, %c0_i32_4 : i32
    %10 = arith.andi %8, %9 : i1
    %11 = arith.extui %10 : i1 to i32
    %c0_i32_5 = arith.constant 0 : i32
    %12 = arith.cmpi ne, %11, %c0_i32_5 : i32
    scf.if %12 {
      %c0 = arith.constant 0 : index
      %c0_8 = arith.constant 0 : index
      %16 = vector.load %arg11[%c0, %c0_8] : memref<1x384xf32, #tpu.memory_space<vmem>>, vector<1x384xf32>
      %c0_9 = arith.constant 0 : index
      %c0_10 = arith.constant 0 : index
      %17 = vector.load %arg7[%c0_9, %c0_10] : memref<384x12xf32, #tpu.memory_space<vmem>>, vector<384x12xf32>
      %cst = arith.constant dense<0.000000e+00> : vector<1x12xf32>
      %18 = tpu.matmul %16, %17, %cst {dimension_numbers = #tpu.dot_dimension_numbers<[1], [0], [0], [1], [0, 0, 1, 1], [], []>} : vector<1x384xf32>, vector<384x12xf32>, vector<1x12xf32> -> vector<1x12xf32>
      %c0_11 = arith.constant 0 : index
      %c0_12 = arith.constant 0 : index
      %19 = vector.load %arg8[%c0_11, %c0_12] : memref<12x384xf32, #tpu.memory_space<vmem>>, vector<12x384xf32>
      %cst_13 = arith.constant dense<0.000000e+00> : vector<1x384xf32>
      %20 = tpu.matmul %18, %19, %cst_13 {dimension_numbers = #tpu.dot_dimension_numbers<[1], [0], [0], [1], [0, 0, 1, 1], [], []>} : vector<1x12xf32>, vector<12x384xf32>, vector<1x384xf32> -> vector<1x384xf32>
      %c0_14 = arith.constant 0 : index
      %c0_15 = arith.constant 0 : index
      %21 = vector.load %arg9[%c0_14, %c0_15] : memref<1x384xf32, #tpu.memory_space<vmem>>, vector<1x384xf32>
      %22 = arith.subf %20, %21 : vector<1x384xf32>
      %cst_16 = arith.constant 6.250000e-02 : f32
      %23 = vector.broadcast %cst_16 : f32 to vector<1x384xf32>
      %24 = arith.mulf %22, %23 : vector<1x384xf32>
      %c0_17 = arith.constant 0 : index
      %c0_18 = arith.constant 0 : index
      %25 = vector.load %arg12[%c0_17, %c0_18] : memref<1x384xf32, #tpu.memory_space<vmem>>, vector<1x384xf32>
      tpu.vector_store %arg12[%c0_17, %c0_18], %24 {strides = array<i32>} : memref<1x384xf32, #tpu.memory_space<vmem>>, vector<1x384xf32>,
    } else {
    }
    %c1_i32_6 = arith.constant 1 : i32
    %13 = arith.cmpi eq, %arg0, %c1_i32_6 : i32
    %14 = arith.extui %13 : i1 to i32
    %c0_i32_7 = arith.constant 0 : i32
    %15 = arith.cmpi ne, %14, %c0_i32_7 : i32
    scf.if %15 {
      %c0 = arith.constant 0 : index
      %c0_8 = arith.constant 0 : index
      %16 = vector.load %arg2[%c0, %c0_8] : memref<1x384xf32, #tpu.memory_space<vmem>>, vector<1x384xf32>
      %c0_9 = arith.constant 0 : index
      %c0_10 = arith.constant 0 : index
      %17 = vector.load %arg12[%c0_9, %c0_10] : memref<1x384xf32, #tpu.memory_space<vmem>>, vector<1x384xf32>
      %18 = arith.mulf %16, %17 : vector<1x384xf32>
      %c0_11 = arith.constant 0 : index
      %c0_12 = arith.constant 0 : index
      %19 = vector.load %arg10[%c0_11, %c0_12] : memref<1x384xf32, #tpu.memory_space<vmem>>, vector<1x384xf32>
      tpu.vector_store %arg10[%c0_11, %c0_12], %18 {strides = array<i32>} : memref<1x384xf32, #tpu.memory_space<vmem>>, vector<1x384xf32>,
    } else {
    }
    return
  }
  func.func @transform_0(%arg0: i32, %arg1: i32) -> (i32, i32) {
    %c0_i32 = arith.constant 0 : i32
    %c0_i32_0 = arith.constant 0 : i32
    return %arg1, %c0_i32 : i32, i32
  }
  func.func @transform_1(%arg0: i32, %arg1: i32) -> (i32, i32) {
    %c0_i32 = arith.constant 0 : i32
    %c0_i32_0 = arith.constant 0 : i32
    %c0_i32_1 = arith.constant 0 : i32
    return %c0_i32, %c0_i32_0 : i32, i32
  }
  func.func @transform_2(%arg0: i32, %arg1: i32) -> (i32, i32) {
    %c0_i32 = arith.constant 0 : i32
    %c0_i32_0 = arith.constant 0 : i32
    %c0_i32_1 = arith.constant 0 : i32
    return %c0_i32, %c0_i32_0 : i32, i32
  }
  func.func @transform_3(%arg0: i32, %arg1: i32) -> (i32, i32) {
    %c0_i32 = arith.constant 0 : i32
    %c0_i32_0 = arith.constant 0 : i32
    %c0_i32_1 = arith.constant 0 : i32
    return %c0_i32, %c0_i32_0 : i32, i32
  }
  func.func @transform_4(%arg0: i32, %arg1: i32) -> (i32, i32) {
    %c0_i32 = arith.constant 0 : i32
    %c0_i32_0 = arith.constant 0 : i32
    %c0_i32_1 = arith.constant 0 : i32
    return %c0_i32, %c0_i32_0 : i32, i32
  }
  func.func @transform_5(%arg0: i32, %arg1: i32) -> (i32, i32) {
    %c0_i32 = arith.constant 0 : i32
    %c0_i32_0 = arith.constant 0 : i32
    %c0_i32_1 = arith.constant 0 : i32
    return %c0_i32, %c0_i32_0 : i32, i32
  }
  func.func @transform_6(%arg0: i32, %arg1: i32) -> (i32, i32) {
    %c0_i32 = arith.constant 0 : i32
    %c0_i32_0 = arith.constant 0 : i32
    %c0_i32_1 = arith.constant 0 : i32
    return %c0_i32, %c0_i32_0 : i32, i32
  }
  func.func @transform_7(%arg0: i32, %arg1: i32) -> (i32, i32) {
    %c0_i32 = arith.constant 0 : i32
    %c0_i32_0 = arith.constant 0 : i32
    %c0_i32_1 = arith.constant 0 : i32
    return %c0_i32, %c0_i32_0 : i32, i32
  }
  func.func @transform_8(%arg0: i32, %arg1: i32) -> (i32, i32) {
    %0 = arith.muli %arg1, %arg0 : i32
    %c0_i32 = arith.constant 0 : i32
    %c0_i32_0 = arith.constant 0 : i32
    return %0, %c0_i32 : i32, i32
  }
}

</mosaic_0001>

<llo_original>
// kernel: tpu_custom_call.1
$region0: #{tpu_custom_call.1}
  #allocation0 [shape = 'u32[]', space=smem, size = 0x4, offset = 0x4, fixed_abs, tag = 'smem constant byte address 0x4 - core index']
  #allocation1 [shape = 'u32[144,128]{1,0:T(1,128)}', space=vmem, size = 0x12000, scoped, tag = 'internal scratch']
  #allocation2 [shape = 'f32[1,384]{1,0:T(1,128)}', space=vmem, size = 0x600, scoped, tag = 'scratch operand']
  #allocation3 [shape = 'f32[1,384]{1,0:T(1,128)}', space=vmem, size = 0x600, scoped, tag = 'scratch operand']
  %s0 = inlined_call_operand.vmem [shape: f32[1,384], index: 0, kind: input, shape index: {}]
  %s1 = inlined_call_operand.hbm [shape: f32[384,384], index: 1, kind: input, shape index: {}]
  %s2 = inlined_call_operand.vmem [shape: f32[1,384], index: 2, kind: input, shape index: {}]
  %s3 = inlined_call_operand.vmem [shape: f32[384,32], index: 3, kind: input, shape index: {}]
  %s4 = inlined_call_operand.vmem [shape: f32[32,384], index: 4, kind: input, shape index: {}]
  %s5 = inlined_call_operand.vmem [shape: f32[384,12], index: 5, kind: input, shape index: {}]
  %s6 = inlined_call_operand.vmem [shape: f32[12,384], index: 6, kind: input, shape index: {}]
  %s7 = inlined_call_operand.vmem [shape: f32[1,384], index: 7, kind: input, shape index: {}]
  %s8 = inlined_call_operand.hbm [shape: f32[1,384], index: 8, kind: output, shape index: {}]
  %s9 = sld [smem:[#allocation0]]
  $region85: #{tpu_custom_call.1} parent=0
    _
  %s11 = ssub.s32 1, %s9
  %s12 = scalar_select 0, %s11, %s9
  $region1: #{tpu_custom_call.1} parent=0
    #allocation4 [shape = 'u8[589824]{0}', space=vmem, size = 0x90000, scoped, tag = 'input window, operand 1, single buffered']
    #allocation5 [shape = 's32[2]{0}', space=sflag, size = 0x8, scoped, tag = 'scoped memory for tpu_custom_call.1']
    #allocation6 [shape = 's32[2]{0}', space=sflag, size = 0x8, scoped, tag = 'scoped memory for tpu_custom_call.1']
    #allocation7 [shape = 'u8[3072]{0}', space=vmem, size = 0xc00, scoped, tag = 'output window, operand 0']
    %13 = vsyncpa [#allocation5], 0
    %14 = vsyncpa [#allocation6], 0
    %s15 = scalar_lea.sflag [#allocation6], 1
    %16 = vsyncpa %s15, 0
    loop: start=0, step=1, limit=4
    $region2: #{tpu_custom_call.1} parent=1 // loop_pre_header
      _
    $region3: #{tpu_custom_call.1} parent=1 // loop_header
      %s18 = sphi 0, %s22
      %p19 = scmp.ge.s32.totalorder %s18, 4
      %s25 = sphi 0, %s37
      %s26 = sphi 0, %s33
      %s27 = sphi 0, %s25
      %s28 = sphi 0, %s26
      %s29 = sphi 0, %s27
      %s30 = sphi 0, %s28
      %s40 = sphi 0, %s42
      %s43 = sphi 0, %s40
      %s44 = sphi 0, %s43
      %s60 = sphi 0, %s44
      %s64 = sphi 0, %s64
      %s66 = sphi 0, %s64
      %s67 = sphi 0, %s66
      %s81 = sphi 0, %s67
      %s85 = sphi 0, %s85
      %s87 = sphi 0, %s85
      %s88 = sphi 0, %s87
      %s102 = sphi 0, %s88
      %s106 = sphi 0, %s106
      %s108 = sphi 0, %s106
      %s109 = sphi 0, %s108
      %s123 = sphi 0, %s109
      %s127 = sphi 0, %s127
      %s129 = sphi 0, %s127
      %s130 = sphi 0, %s129
      %s144 = sphi 0, %s130
      %s148 = sphi 0, %s148
      %s150 = sphi 0, %s148
      %s151 = sphi 0, %s150
      %s165 = sphi 0, %s151
      %s169 = sphi 0, %s169
      %s171 = sphi 0, %s169
      %s172 = sphi 0, %s171
      %s186 = sphi 0, %s172
      %s190 = sphi 0, %s190
      %s192 = sphi 0, %s190
      %s193 = sphi 0, %s192
      %s207 = sphi 0, %s193
      %s215 = sphi 0, %s217
      %s218 = sphi 0, %s215
      %s219 = sphi 0, %s218
      %s235 = sphi 0, %s219
    $region4: #{tpu_custom_call.1} parent=1 // loop_header_branch
      %21 = sbr.rel (%p19) target = $region8
    $region5: #{tpu_custom_call.1} parent=1 // loop_body
      %s23 = ssub.s32 %s18, 1
      %s24 = ssub.s32 %s18, 2
      %s31 = sadd.s32 1, %s26
      %p32 = scmp.ge.s32.totalorder %s31, 1
      %s33 = scalar_select %p32, 0, %s31
      %s34 = sadd.s32 1, %s25
      %s35 = scalar_select %p32, %s34, %s25
      %p36 = scmp.ge.s32.totalorder %s35, 2
      %s37 = scalar_select %p36, 0, %s35
      %s38 = ssub.s32 %s26, %s33
      %p39 = scmp.eq.s32.totalorder %s38, 0
      %s41 = sadd.s32 %s40, 1
      %s42 = scalar_select %p39, %s40, %s41
      %p45 = pneg %p39
      %p46 = scmp.eq.s32.totalorder %s18, 1
      %p47 = por %p45, %p46
      %p48 = scmp.ne.s32.totalorder %s40, %s43
      %p49 = scmp.eq.s32.totalorder %s18, 0
      %p50 = por %p48, %p49
      %p51 = scmp.ne.s32.totalorder %s40, %s43
      %p52 = scmp.eq.s32.totalorder %s23, 1
      %p53 = por %p51, %p52
      %p54 = scmp.ne.s32.totalorder %s43, %s44
      %p55 = scmp.eq.s32.totalorder %s23, 0
      %p56 = por %p54, %p55
      %p57 = scmp.ne.s32.totalorder %s43, %s44
      %p58 = scmp.eq.s32.totalorder %s24, 1
      %p59 = por %p57, %p58
      %p61 = scmp.ne.s32.totalorder %s44, %s60
      %p62 = scmp.eq.s32.totalorder %s24, 0
      %p63 = por %p61, %p62
      %s65 = sadd.s32 %s64, 1
      %p68 = scmp.eq.s32.totalorder %s18, 1
      %p69 = scmp.ne.s32.totalorder %s64, %s66
      %p70 = scmp.eq.s32.totalorder %s18, 0
      %p71 = por %p69, %p70
      %p72 = scmp.ne.s32.totalorder %s64, %s66
      %p73 = scmp.eq.s32.totalorder %s23, 1
      %p74 = por %p72, %p73
      %p75 = scmp.ne.s32.totalorder %s66, %s67
      %p76 = scmp.eq.s32.totalorder %s23, 0
      %p77 = por %p75, %p76
      %p78 = scmp.ne.s32.totalorder %s66, %s67
      %p79 = scmp.eq.s32.totalorder %s24, 1
      %p80 = por %p78, %p79
      %p82 = scmp.ne.s32.totalorder %s67, %s81
      %p83 = scmp.eq.s32.totalorder %s24, 0
      %p84 = por %p82, %p83
      %s86 = sadd.s32 %s85, 1
      %p89 = scmp.eq.s32.totalorder %s18, 1
      %p90 = scmp.ne.s32.totalorder %s85, %s87
      %p91 = scmp.eq.s32.totalorder %s18, 0
      %p92 = por %p90, %p91
      %p93 = scmp.ne.s32.totalorder %s85, %s87
      %p94 = scmp.eq.s32.totalorder %s23, 1
      %p95 = por %p93, %p94
      %p96 = scmp.ne.s32.totalorder %s87, %s88
      %p97 = scmp.eq.s32.totalorder %s23, 0
      %p98 = por %p96, %p97
      %p99 = scmp.ne.s32.totalorder %s87, %s88
      %p100 = scmp.eq.s32.totalorder %s24, 1
      %p101 = por %p99, %p100
      %p103 = scmp.ne.s32.totalorder %s88, %s102
      %p104 = scmp.eq.s32.totalorder %s24, 0
      %p105 = por %p103, %p104
      %s107 = sadd.s32 %s106, 1
      %p110 = scmp.eq.s32.totalorder %s18, 1
      %p111 = scmp.ne.s32.totalorder %s106, %s108
      %p112 = scmp.eq.s32.totalorder %s18, 0
      %p113 = por %p111, %p112
      %p114 = scmp.ne.s32.totalorder %s106, %s108
      %p115 = scmp.eq.s32.totalorder %s23, 1
      %p116 = por %p114, %p115
      %p117 = scmp.ne.s32.totalorder %s108, %s109
      %p118 = scmp.eq.s32.totalorder %s23, 0
      %p119 = por %p117, %p118
      %p120 = scmp.ne.s32.totalorder %s108, %s109
      %p121 = scmp.eq.s32.totalorder %s24, 1
      %p122 = por %p120, %p121
      %p124 = scmp.ne.s32.totalorder %s109, %s123
      %p125 = scmp.eq.s32.totalorder %s24, 0
      %p126 = por %p124, %p125
      %s128 = sadd.s32 %s127, 1
      %p131 = scmp.eq.s32.totalorder %s18, 1
      %p132 = scmp.ne.s32.totalorder %s127, %s129
      %p133 = scmp.eq.s32.totalorder %s18, 0
      %p134 = por %p132, %p133
      %p135 = scmp.ne.s32.totalorder %s127, %s129
      %p136 = scmp.eq.s32.totalorder %s23, 1
      %p137 = por %p135, %p136
      %p138 = scmp.ne.s32.totalorder %s129, %s130
      %p139 = scmp.eq.s32.totalorder %s23, 0
      %p140 = por %p138, %p139
      %p141 = scmp.ne.s32.totalorder %s129, %s130
      %p142 = scmp.eq.s32.totalorder %s24, 1
      %p143 = por %p141, %p142
      %p145 = scmp.ne.s32.totalorder %s130, %s144
      %p146 = scmp.eq.s32.totalorder %s24, 0
      %p147 = por %p145, %p146
      %s149 = sadd.s32 %s148, 1
      %p152 = scmp.eq.s32.totalorder %s18, 1
      %p153 = scmp.ne.s32.totalorder %s148, %s150
      %p154 = scmp.eq.s32.totalorder %s18, 0
      %p155 = por %p153, %p154
      %p156 = scmp.ne.s32.totalorder %s148, %s150
      %p157 = scmp.eq.s32.totalorder %s23, 1
      %p158 = por %p156, %p157
      %p159 = scmp.ne.s32.totalorder %s150, %s151
      %p160 = scmp.eq.s32.totalorder %s23, 0
      %p161 = por %p159, %p160
      %p162 = scmp.ne.s32.totalorder %s150, %s151
      %p163 = scmp.eq.s32.totalorder %s24, 1
      %p164 = por %p162, %p163
      %p166 = scmp.ne.s32.totalorder %s151, %s165
      %p167 = scmp.eq.s32.totalorder %s24, 0
      %p168 = por %p166, %p167
      %s170 = sadd.s32 %s169, 1
      %p173 = scmp.eq.s32.totalorder %s18, 1
      %p174 = scmp.ne.s32.totalorder %s169, %s171
      %p175 = scmp.eq.s32.totalorder %s18, 0
      %p176 = por %p174, %p175
      %p177 = scmp.ne.s32.totalorder %s169, %s171
      %p178 = scmp.eq.s32.totalorder %s23, 1
      %p179 = por %p177, %p178
      %p180 = scmp.ne.s32.totalorder %s171, %s172
      %p181 = scmp.eq.s32.totalorder %s23, 0
      %p182 = por %p180, %p181
      %p183 = scmp.ne.s32.totalorder %s171, %s172
      %p184 = scmp.eq.s32.totalorder %s24, 1
      %p185 = por %p183, %p184
      %p187 = scmp.ne.s32.totalorder %s172, %s186
      %p188 = scmp.eq.s32.totalorder %s24, 0
      %p189 = por %p187, %p188
      %s191 = sadd.s32 %s190, 1
      %p194 = scmp.eq.s32.totalorder %s18, 1
      %p195 = scmp.ne.s32.totalorder %s190, %s192
      %p196 = scmp.eq.s32.totalorder %s18, 0
      %p197 = por %p195, %p196
      %p198 = scmp.ne.s32.totalorder %s190, %s192
      %p199 = scmp.eq.s32.totalorder %s23, 1
      %p200 = por %p198, %p199
      %p201 = scmp.ne.s32.totalorder %s192, %s193
      %p202 = scmp.eq.s32.totalorder %s23, 0
      %p203 = por %p201, %p202
      %p204 = scmp.ne.s32.totalorder %s192, %s193
      %p205 = scmp.eq.s32.totalorder %s24, 1
      %p206 = por %p204, %p205
      %p208 = scmp.ne.s32.totalorder %s193, %s207
      %p209 = scmp.eq.s32.totalorder %s24, 0
      %p210 = por %p208, %p209
      %s211 = smul.u32 %s26, %s25
      %s212 = smul.u32 %s33, %s37
      %s213 = ssub.s32 %s211, %s212
      %p214 = scmp.eq.s32.totalorder %s213, 0
      %s216 = sadd.s32 %s215, 1
      %s217 = scalar_select %p214, %s215, %s216
      %p220 = pneg %p214
      %p221 = scmp.eq.s32.totalorder %s18, 1
      %p222 = por %p220, %p221
      %p223 = scmp.ne.s32.totalorder %s215, %s218
      %p224 = scmp.eq.s32.totalorder %s18, 0
      %p225 = por %p223, %p224
      %p226 = scmp.ne.s32.totalorder %s215, %s218
      %p227 = scmp.eq.s32.totalorder %s23, 1
      %p228 = por %p226, %p227
      %p229 = scmp.ne.s32.totalorder %s218, %s219
      %p230 = scmp.eq.s32.totalorder %s23, 0
      %p231 = por %p229, %p230
      %p232 = scmp.ne.s32.totalorder %s218, %s219
      %p233 = scmp.eq.s32.totalorder %s24, 1
      %p234 = por %p232, %p233
      %p236 = scmp.ne.s32.totalorder %s219, %s235
      %p237 = scmp.eq.s32.totalorder %s24, 0
      %p238 = por %p236, %p237
      %p239 = scmp.le.s32.totalorder 1, %s18
      %p240 = scmp.lt.s32.totalorder %s18, 3
      %p241 = pnand %p239, %p240
      %p242 = pneg %p241
      // Predicated region
      $region9: #{tpu_custom_call.1} parent=5 // pred_check
        _
      $region10: #{tpu_custom_call.1} parent=5 // pred_check_branch
        %244 = sbr.rel (%p241) target = $region12
      $region11: #{tpu_custom_call.1} parent=5 // pred_region
        %s245 = ssub.s32 %s18, 1
        // Predicated region
        $region13: #{tpu_custom_call.1} parent=11 // pred_check
          %p246 = pneg %p56
        $region14: #{tpu_custom_call.1} parent=11 // pred_check_branch
          %248 = sbr.rel (%p246) target = $region16
        $region15: #{tpu_custom_call.1} parent=11 // pred_region
          %p249 = scmp.lt.s32.totalorder %s28, 0
          %s250 = scalar_select %p249, %s28, 0
          %s251 = smul.addr %s250, 3
          %s252 = scalar_lea.vmem %s0, %s251
        $region16: #{tpu_custom_call.1} parent=11 // pred_fallthru
          _
        // Predicated region
        $region17: #{tpu_custom_call.1} parent=11 // pred_check
          %p253 = pneg %p77
        $region18: #{tpu_custom_call.1} parent=11 // pred_check_branch
          %255 = sbr.rel (%p253) target = $region20
        $region19: #{tpu_custom_call.1} parent=11 // pred_region
          %s257 = ssub.s32 18432, 18432
          %258 = vsyncadd [#allocation5], %s257
          %s259 = sshll.u32 [#allocation4], 4
          %s260 = int_to_ptr.vmem [resolvable:$true] %s259
          %265 = dma.hbm_to_vmem [thread:$0]  %s1, 18432, %s260, [#allocation5], 384, 384, 24
        $region20: #{tpu_custom_call.1} parent=11 // pred_fallthru
          _
        // Predicated region
        $region21: #{tpu_custom_call.1} parent=11 // pred_check
          %p266 = pneg %p98
        $region22: #{tpu_custom_call.1} parent=11 // pred_check_branch
          %268 = sbr.rel (%p266) target = $region24
        $region23: #{tpu_custom_call.1} parent=11 // pred_region
          _
        $region24: #{tpu_custom_call.1} parent=11 // pred_fallthru
          _
        // Predicated region
        $region25: #{tpu_custom_call.1} parent=11 // pred_check
          %p269 = pneg %p119
        $region26: #{tpu_custom_call.1} parent=11 // pred_check_branch
          %271 = sbr.rel (%p269) target = $region28
        $region27: #{tpu_custom_call.1} parent=11 // pred_region
          _
        $region28: #{tpu_custom_call.1} parent=11 // pred_fallthru
          _
        // Predicated region
        $region29: #{tpu_custom_call.1} parent=11 // pred_check
          %p272 = pneg %p140
        $region30: #{tpu_custom_call.1} parent=11 // pred_check_branch
          %274 = sbr.rel (%p272) target = $region32
        $region31: #{tpu_custom_call.1} parent=11 // pred_region
          _
        $region32: #{tpu_custom_call.1} parent=11 // pred_fallthru
          _
        // Predicated region
        $region33: #{tpu_custom_call.1} parent=11 // pred_check
          %p275 = pneg %p161
        $region34: #{tpu_custom_call.1} parent=11 // pred_check_branch
          %277 = sbr.rel (%p275) target = $region36
        $region35: #{tpu_custom_call.1} parent=11 // pred_region
          _
        $region36: #{tpu_custom_call.1} parent=11 // pred_fallthru
          _
        // Predicated region
        $region37: #{tpu_custom_call.1} parent=11 // pred_check
          %p278 = pneg %p182
        $region38: #{tpu_custom_call.1} parent=11 // pred_check_branch
          %280 = sbr.rel (%p278) target = $region40
        $region39: #{tpu_custom_call.1} parent=11 // pred_region
          _
        $region40: #{tpu_custom_call.1} parent=11 // pred_fallthru
          _
        // Predicated region
        $region41: #{tpu_custom_call.1} parent=11 // pred_check
          %p281 = pneg %p203
        $region42: #{tpu_custom_call.1} parent=11 // pred_check_branch
          %283 = sbr.rel (%p281) target = $region44
        $region43: #{tpu_custom_call.1} parent=11 // pred_region
          _
        $region44: #{tpu_custom_call.1} parent=11 // pred_fallthru
          _
      $region12: #{tpu_custom_call.1} parent=5 // pred_fallthru
        _
      %p284 = scmp.lt.s32.totalorder %s18, 2
      // Predicated region
      $region45: #{tpu_custom_call.1} parent=5 // pred_check
        %p285 = pneg %p284
      $region46: #{tpu_custom_call.1} parent=5 // pred_check_branch
        %287 = sbr.rel (%p285) target = $region48
      $region47: #{tpu_custom_call.1} parent=5 // pred_region
        _
      $region48: #{tpu_custom_call.1} parent=5 // pred_fallthru
        _
      %p288 = scmp.le.s32.totalorder 1, %s18
      %p289 = scmp.lt.s32.totalorder %s18, 3
      %p290 = pnand %p288, %p289
      %p291 = pneg %p290
      // Predicated region
      $region49: #{tpu_custom_call.1} parent=5 // pred_check
        _
      $region50: #{tpu_custom_call.1} parent=5 // pred_check_branch
        %293 = sbr.rel (%p290) target = $region52
      $region51: #{tpu_custom_call.1} parent=5 // pred_region
        %s294 = ssub.s32 %s18, 1
        // Predicated region
        $region53: #{tpu_custom_call.1} parent=51 // pred_check
          %p295 = pneg %p77
        $region54: #{tpu_custom_call.1} parent=51 // pred_check_branch
          %297 = sbr.rel (%p295) target = $region56
        $region55: #{tpu_custom_call.1} parent=51 // pred_region
          %298 = dma.done [#allocation5], 18432
        $region56: #{tpu_custom_call.1} parent=51 // pred_fallthru
          _
        %p299 = scmp.lt.s32.totalorder %s28, 0
        %s300 = scalar_select %p299, %s28, 0
        %s301 = smul.addr %s300, 3
        %s302 = scalar_lea.vmem %s0, %s301
        %p303 = pneg %p56
        %p304 = pneg %p53
        %p305 = pneg %p77
        %p306 = pneg %p74
        %p307 = pneg %p98
        %p308 = pneg %p95
        %p309 = pneg %p119
        %p310 = pneg %p116
        %p311 = pneg %p140
        %p312 = pneg %p137
        %p313 = pneg %p161
        %p314 = pneg %p158
        %p315 = pneg %p182
        %p316 = pneg %p179
        %p317 = pneg %p203
        %p318 = pneg %p200
        %p319 = pneg %p231
        %p320 = pneg %p228
        %s321 = sand.u32 %s218, 1
        %s322 = scalar_lea.sflag [#allocation6], %s321
        %s323 = sand.u32 %s218, 1
        %s324 = smul.addr %s323, 3
        %s325 = scalar_lea.vmem [#allocation7], %s324
        %p326 = scmp.lt.s32.totalorder %s28, 0
        %s327 = scalar_select %p326, %s28, 0
        %s328 = smul.addr %s327, 3
        %s329 = scalar_lea.vmem %s0, %s328
        %s330 = smul.u32 %s28, %s27
        %p331 = scmp.eq.s32.totalorder %s27, 0
        %p332 = scmp.eq.s32.totalorder %s28, 0
        %p333 = pnand %p331, %p332
        %p334 = pneg %p333
        // Predicated region
        $region57: #{tpu_custom_call.1} parent=51 // pred_check
          _
        $region58: #{tpu_custom_call.1} parent=51 // pred_check_branch
          %336 = sbr.rel (%p333) target = $region60
        $region59: #{tpu_custom_call.1} parent=51 // pred_region
          %v337 = vlaneseq
          %vm338 = vcmp.ge.s32.totalorder %v337, 0
          %vm339 = vcmp.lt.s32.totalorder %v337, 384
          %vm340 = vmand %vm338, %vm339
          %341 = vst.msk [vmem:[#allocation2] sm:$0x7] %vm340, 0.0
        $region60: #{tpu_custom_call.1} parent=51 // pred_fallthru
          _
        // Predicated region
        $region61: #{tpu_custom_call.1} parent=51 // pred_check
          %p342 = pneg %p331
        $region62: #{tpu_custom_call.1} parent=51 // pred_check_branch
          %344 = sbr.rel (%p342) target = $region64
        $region63: #{tpu_custom_call.1} parent=51 // pred_region
          %v345 = vld [vmem:[%s329] sm:$0x7]
          %v346 = vtanh.pop %v345
          %v347 = vld [vmem:[#allocation4] sm:$0xff]
          %v348 = vld [vmem:[#allocation4 + $0x8] sm:$0xff]
          %v349 = vld [vmem:[#allocation4 + $0x10] sm:$0xff]
          %v350 = vld [vmem:[#allocation4 + $0x18] sm:$0xff]
          %v351 = vld [vmem:[#allocation4 + $0x20] sm:$0xff]
          %v352 = vld [vmem:[#allocation4 + $0x28] sm:$0xff]
          %v353 = vld [vmem:[#allocation4 + $0x30] sm:$0xff]
          %v354 = vld [vmem:[#allocation4 + $0x38] sm:$0xff]
          %v355 = vld [vmem:[#allocation4 + $0x40] sm:$0xff]
          %v356 = vld [vmem:[#allocation4 + $0x48] sm:$0xff]
          %v357 = vld [vmem:[#allocation4 + $0x50] sm:$0xff]
          %v358 = vld [vmem:[#allocation4 + $0x58] sm:$0xff]
          %v359 = vld [vmem:[#allocation4 + $0x60] sm:$0xff]
          %v360 = vld [vmem:[#allocation4 + $0x68] sm:$0xff]
          %v361 = vld [vmem:[#allocation4 + $0x70] sm:$0xff]
          %v362 = vld [vmem:[#allocation4 + $0x78] sm:$0xff]
          %v363 = vld [vmem:[#allocation4 + $0x80] sm:$0xff]
          %v364 = vld [vmem:[#allocation4 + $0x88] sm:$0xff]
          %v365 = vld [vmem:[#allocation4 + $0x90] sm:$0xff]
          %v366 = vld [vmem:[#allocation4 + $0x98] sm:$0xff]
          %v367 = vld [vmem:[#allocation4 + $0xa0] sm:$0xff]
          %v368 = vld [vmem:[#allocation4 + $0xa8] sm:$0xff]
          %v369 = vld [vmem:[#allocation4 + $0xb0] sm:$0xff]
          %v370 = vld [vmem:[#allocation4 + $0xb8] sm:$0xff]
          %v371 = vld [vmem:[#allocation4 + $0xc0] sm:$0xff]
          %v372 = vld [vmem:[#allocation4 + $0xc8] sm:$0xff]
          %v373 = vld [vmem:[#allocation4 + $0xd0] sm:$0xff]
          %v374 = vld [vmem:[#allocation4 + $0xd8] sm:$0xff]
          %v375 = vld [vmem:[#allocation4 + $0xe0] sm:$0xff]
          %v376 = vld [vmem:[#allocation4 + $0xe8] sm:$0xff]
          %v377 = vld [vmem:[#allocation4 + $0xf0] sm:$0xff]
          %v378 = vld [vmem:[#allocation4 + $0xf8] sm:$0xff]
          %v379 = vld [vmem:[#allocation4 + $0x100] sm:$0xff]
          %v380 = vld [vmem:[#allocation4 + $0x108] sm:$0xff]
          %v381 = vld [vmem:[#allocation4 + $0x110] sm:$0xff]
          %v382 = vld [vmem:[#allocation4 + $0x118] sm:$0xff]
          %v383 = vld [vmem:[#allocation4 + $0x120] sm:$0xff]
          %v384 = vld [vmem:[#allocation4 + $0x128] sm:$0xff]
          %v385 = vld [vmem:[#allocation4 + $0x130] sm:$0xff]
          %v386 = vld [vmem:[#allocation4 + $0x138] sm:$0xff]
          %v387 = vld [vmem:[#allocation4 + $0x140] sm:$0xff]
          %v388 = vld [vmem:[#allocation4 + $0x148] sm:$0xff]
          %v389 = vld [vmem:[#allocation4 + $0x150] sm:$0xff]
          %v390 = vld [vmem:[#allocation4 + $0x158] sm:$0xff]
          %v391 = vld [vmem:[#allocation4 + $0x160] sm:$0xff]
          %v392 = vld [vmem:[#allocation4 + $0x168] sm:$0xff]
          %v393 = vld [vmem:[#allocation4 + $0x170] sm:$0xff]
          %v394 = vld [vmem:[#allocation4 + $0x178] sm:$0xff]
          %v395 = vld [vmem:[#allocation4 + $0x180] sm:$0xff]
          %v396 = vld [vmem:[#allocation4 + $0x188] sm:$0xff]
          %v397 = vld [vmem:[#allocation4 + $0x190] sm:$0xff]
          %v398 = vld [vmem:[#allocation4 + $0x198] sm:$0xff]
          %v399 = vld [vmem:[#allocation4 + $0x1a0] sm:$0xff]
          %v400 = vld [vmem:[#allocation4 + $0x1a8] sm:$0xff]
          %v401 = vld [vmem:[#allocation4 + $0x1b0] sm:$0xff]
          %v402 = vld [vmem:[#allocation4 + $0x1b8] sm:$0xff]
          %v403 = vld [vmem:[#allocation4 + $0x1c0] sm:$0xff]
          %v404 = vld [vmem:[#allocation4 + $0x1c8] sm:$0xff]
          %v405 = vld [vmem:[#allocation4 + $0x1d0] sm:$0xff]
          %v406 = vld [vmem:[#allocation4 + $0x1d8] sm:$0xff]
          %v407 = vld [vmem:[#allocation4 + $0x1e0] sm:$0xff]
          %v408 = vld [vmem:[#allocation4 + $0x1e8] sm:$0xff]
          %v409 = vld [vmem:[#allocation4 + $0x1f0] sm:$0xff]
          %v410 = vld [vmem:[#allocation4 + $0x1f8] sm:$0xff]
          %v411 = vld [vmem:[#allocation4 + $0x200] sm:$0xff]
          %v412 = vld [vmem:[#allocation4 + $0x208] sm:$0xff]
          %v413 = vld [vmem:[#allocation4 + $0x210] sm:$0xff]
          %v414 = vld [vmem:[#allocation4 + $0x218] sm:$0xff]
          %v415 = vld [vmem:[#allocation4 + $0x220] sm:$0xff]
          %v416 = vld [vmem:[#allocation4 + $0x228] sm:$0xff]
          %v417 = vld [vmem:[#allocation4 + $0x230] sm:$0xff]
          %v418 = vld [vmem:[#allocation4 + $0x238] sm:$0xff]
          %v419 = vld [vmem:[#allocation4 + $0x240] sm:$0xff]
          %v420 = vld [vmem:[#allocation4 + $0x248] sm:$0xff]
          %v421 = vld [vmem:[#allocation4 + $0x250] sm:$0xff]
          %v422 = vld [vmem:[#allocation4 + $0x258] sm:$0xff]
          %v423 = vld [vmem:[#allocation4 + $0x260] sm:$0xff]
          %v424 = vld [vmem:[#allocation4 + $0x268] sm:$0xff]
          %v425 = vld [vmem:[#allocation4 + $0x270] sm:$0xff]
          %v426 = vld [vmem:[#allocation4 + $0x278] sm:$0xff]
          %v427 = vld [vmem:[#allocation4 + $0x280] sm:$0xff]
          %v428 = vld [vmem:[#allocation4 + $0x288] sm:$0xff]
          %v429 = vld [vmem:[#allocation4 + $0x290] sm:$0xff]
          %v430 = vld [vmem:[#allocation4 + $0x298] sm:$0xff]
          %v431 = vld [vmem:[#allocation4 + $0x2a0] sm:$0xff]
          %v432 = vld [vmem:[#allocation4 + $0x2a8] sm:$0xff]
          %v433 = vld [vmem:[#allocation4 + $0x2b0] sm:$0xff]
          %v434 = vld [vmem:[#allocation4 + $0x2b8] sm:$0xff]
          %v435 = vld [vmem:[#allocation4 + $0x2c0] sm:$0xff]
          %v436 = vld [vmem:[#allocation4 + $0x2c8] sm:$0xff]
          %v437 = vld [vmem:[#allocation4 + $0x2d0] sm:$0xff]
          %v438 = vld [vmem:[#allocation4 + $0x2d8] sm:$0xff]
          %v439 = vld [vmem:[#allocation4 + $0x2e0] sm:$0xff]
          %v440 = vld [vmem:[#allocation4 + $0x2e8] sm:$0xff]
          %v441 = vld [vmem:[#allocation4 + $0x2f0] sm:$0xff]
          %v442 = vld [vmem:[#allocation4 + $0x2f8] sm:$0xff]
          %v443 = vld [vmem:[#allocation4 + $0x300] sm:$0xff]
          %v444 = vld [vmem:[#allocation4 + $0x308] sm:$0xff]
          %v445 = vld [vmem:[#allocation4 + $0x310] sm:$0xff]
          %v446 = vld [vmem:[#allocation4 + $0x318] sm:$0xff]
          %v447 = vld [vmem:[#allocation4 + $0x320] sm:$0xff]
          %v448 = vld [vmem:[#allocation4 + $0x328] sm:$0xff]
          %v449 = vld [vmem:[#allocation4 + $0x330] sm:$0xff]
          %v450 = vld [vmem:[#allocation4 + $0x338] sm:$0xff]
          %v451 = vld [vmem:[#allocation4 + $0x340] sm:$0xff]
          %v452 = vld [vmem:[#allocation4 + $0x348] sm:$0xff]
          %v453 = vld [vmem:[#allocation4 + $0x350] sm:$0xff]
          %v454 = vld [vmem:[#allocation4 + $0x358] sm:$0xff]
          %v455 = vld [vmem:[#allocation4 + $0x360] sm:$0xff]
          %v456 = vld [vmem:[#allocation4 + $0x368] sm:$0xff]
          %v457 = vld [vmem:[#allocation4 + $0x370] sm:$0xff]
          %v458 = vld [vmem:[#allocation4 + $0x378] sm:$0xff]
          %v459 = vld [vmem:[#allocation4 + $0x380] sm:$0xff]
          %v460 = vld [vmem:[#allocation4 + $0x388] sm:$0xff]
          %v461 = vld [vmem:[#allocation4 + $0x390] sm:$0xff]
          %v462 = vld [vmem:[#allocation4 + $0x398] sm:$0xff]
          %v463 = vld [vmem:[#allocation4 + $0x3a0] sm:$0xff]
          %v464 = vld [vmem:[#allocation4 + $0x3a8] sm:$0xff]
          %v465 = vld [vmem:[#allocation4 + $0x3b0] sm:$0xff]
          %v466 = vld [vmem:[#allocation4 + $0x3b8] sm:$0xff]
          %v467 = vld [vmem:[#allocation4 + $0x3c0] sm:$0xff]
          %v468 = vld [vmem:[#allocation4 + $0x3c8] sm:$0xff]
          %v469 = vld [vmem:[#allocation4 + $0x3d0] sm:$0xff]
          %v470 = vld [vmem:[#allocation4 + $0x3d8] sm:$0xff]
          %v471 = vld [vmem:[#allocation4 + $0x3e0] sm:$0xff]
          %v472 = vld [vmem:[#allocation4 + $0x3e8] sm:$0xff]
          %v473 = vld [vmem:[#allocation4 + $0x3f0] sm:$0xff]
          %v474 = vld [vmem:[#allocation4 + $0x3f8] sm:$0xff]
          %v475 = vld [vmem:[#allocation4 + $0x400] sm:$0xff]
          %v476 = vld [vmem:[#allocation4 + $0x408] sm:$0xff]
          %v477 = vld [vmem:[#allocation4 + $0x410] sm:$0xff]
          %v478 = vld [vmem:[#allocation4 + $0x418] sm:$0xff]
          %v479 = vld [vmem:[#allocation4 + $0x420] sm:$0xff]
          %v480 = vld [vmem:[#allocation4 + $0x428] sm:$0xff]
          %v481 = vld [vmem:[#allocation4 + $0x430] sm:$0xff]
          %v482 = vld [vmem:[#allocation4 + $0x438] sm:$0xff]
          %v483 = vld [vmem:[#allocation4 + $0x440] sm:$0xff]
          %v484 = vld [vmem:[#allocation4 + $0x448] sm:$0xff]
          %v485 = vld [vmem:[#allocation4 + $0x450] sm:$0xff]
          %v486 = vld [vmem:[#allocation4 + $0x458] sm:$0xff]
          %v487 = vld [vmem:[#allocation4 + $0x460] sm:$0xff]
          %v488 = vld [vmem:[#allocation4 + $0x468] sm:$0xff]
          %v489 = vld [vmem:[#allocation4 + $0x470] sm:$0xff]
          %v490 = vld [vmem:[#allocation4 + $0x478] sm:$0xff]
          %v491 = vld [vmem:[%s2] sm:$0x7]
          %v493 = vlaneseq
          %v494 = vshrl.u32 %v493, 7
          %v495 = vsub.s32 0, %v494
          %v496 = vrot.slane %v346, %v495
          %v497 = vlaneseq
          %v498 = vshrl.u32 %v497, 7
          %v499 = vsub.s32 1, %v498
          %v500 = vrot.slane %v346, %v499
          %v501 = vlaneseq
          %v502 = vshrl.u32 %v501, 7
          %v503 = vsub.s32 2, %v502
          %v504 = vrot.slane %v346, %v503
          %v509 = vlaneseq
          %v510 = vshrl.u32 %v509, 7
          %v511 = vsub.s32 0, %v510
          %v512 = vrot.slane %v491, %v511
          %v513 = vlaneseq
          %v514 = vshrl.u32 %v513, 7
          %v515 = vsub.s32 1, %v514
          %v516 = vrot.slane %v491, %v515
          %v517 = vlaneseq
          %v518 = vshrl.u32 %v517, 7
          %v519 = vsub.s32 2, %v518
          %v520 = vrot.slane %v491, %v519
          %524 = vmatprep.subr.mxu0 %v348
          %525 = vmatpush1.msra.mxu0 %v347
          %526 = vmatprep.subr.mxu0 %v351
          %527 = vmatpush1.msra.mxu0 %v350
          %528 = vmatprep.subr.mxu0 %v354
          %529 = vmatpush1.msra.mxu0 %v353
          %530 = vmatprep.subr.mxu0 %v357
          %531 = vmatpush1.msra.mxu0 %v356
          %532 = vmatprep.subr.mxu0 %v360
          %533 = vmatpush1.msra.mxu0 %v359
          %534 = vmatprep.subr.mxu0 %v363
          %535 = vmatpush1.msra.mxu0 %v362
          %536 = vmatprep.subr.mxu0 %v366
          %537 = vmatpush1.msra.mxu0 %v365
          %538 = vmatprep.subr.mxu0 %v369
          %539 = vmatpush1.msra.mxu0 %v368
          %540 = vmatprep.subr.mxu0 %v372
          %541 = vmatpush1.msra.mxu0 %v371
          %542 = vmatprep.subr.mxu0 %v375
          %543 = vmatpush1.msra.mxu0 %v374
          %544 = vmatprep.subr.mxu0 %v378
          %545 = vmatpush1.msra.mxu0 %v377
          %546 = vmatprep.subr.mxu0 %v381
          %547 = vmatpush1.msra.mxu0 %v380
          %548 = vmatprep.subr.mxu0 %v384
          %549 = vmatpush1.msra.mxu0 %v383
          %550 = vmatprep.subr.mxu0 %v387
          %551 = vmatpush1.msra.mxu0 %v386
          %552 = vmatprep.subr.mxu0 %v390
          %553 = vmatpush1.msra.mxu0 %v389
          %554 = vmatprep.subr.mxu0 %v393
          %555 = vmatpush1.msra.mxu0 %v392
          %556 = vmatprep.subr.mxu0 %v396
          %557 = vmatpush1.msra.mxu0 %v395
          %558 = vmatprep.subr.mxu0 %v399
          %559 = vmatpush1.msra.mxu0 %v398
          %560 = vmatprep.subr.mxu0 %v402
          %561 = vmatpush1.msra.mxu0 %v401
          %562 = vmatprep.subr.mxu0 %v405
          %563 = vmatpush1.msra.mxu0 %v404
          %564 = vmatprep.subr.mxu0 %v408
          %565 = vmatpush1.msra.mxu0 %v407
          %566 = vmatprep.subr.mxu0 %v411
          %567 = vmatpush1.msra.mxu0 %v410
          %568 = vmatprep.subr.mxu0 %v414
          %569 = vmatpush1.msra.mxu0 %v413
          %570 = vmatprep.subr.mxu0 %v417
          %571 = vmatpush1.msra.mxu0 %v416
          %572 = vmatprep.subr.mxu0 %v420
          %573 = vmatpush1.msra.mxu0 %v419
          %574 = vmatprep.subr.mxu0 %v423
          %575 = vmatpush1.msra.mxu0 %v422
          %576 = vmatprep.subr.mxu0 %v426
          %577 = vmatpush1.msra.mxu0 %v425
          %578 = vmatprep.subr.mxu0 %v429
          %579 = vmatpush1.msra.mxu0 %v428
          %580 = vmatprep.subr.mxu0 %v432
          %581 = vmatpush1.msra.mxu0 %v431
          %582 = vmatprep.subr.mxu0 %v435
          %583 = vmatpush1.msra.mxu0 %v434
          %584 = vmatprep.subr.mxu0 %v438
          %585 = vmatpush1.msra.mxu0 %v437
          %586 = vmatprep.subr.mxu0 %v441
          %587 = vmatpush1.msra.mxu0 %v440
          %588 = vmatprep.mubr.f32.mxu0 %v500
          %589 = vmatmul.mubr.f32.gmra.mrb[0].mxu0 %v496
          %v590 = vpop.f32.mrb[0].mxu0
          %v591 = vadd.f32 %v512, %v590
          %v592 = vpop.f32.mrb[0].mxu0
          %v593 = vadd.f32 %v516, %v592
          %594 = vdwg.mxu0
          %595 = vmatprep.subr.mxu0 %v444
          %596 = vmatpush1.msra.mxu0 %v443
          %597 = vmatprep.subr.mxu0 %v447
          %598 = vmatpush1.msra.mxu0 %v446
          %599 = vmatprep.subr.mxu0 %v450
          %600 = vmatpush1.msra.mxu0 %v449
          %601 = vmatprep.subr.mxu0 %v453
          %602 = vmatpush1.msra.mxu0 %v452
          %603 = vmatprep.subr.mxu0 %v456
          %604 = vmatpush1.msra.mxu0 %v455
          %605 = vmatprep.subr.mxu0 %v459
          %606 = vmatpush1.msra.mxu0 %v458
          %607 = vmatprep.subr.mxu0 %v462
          %608 = vmatpush1.msra.mxu0 %v461
          %609 = vmatprep.subr.mxu0 %v465
          %610 = vmatpush1.msra.mxu0 %v464
          %611 = vmatprep.subr.mxu0 %v468
          %612 = vmatpush1.msra.mxu0 %v467
          %613 = vmatprep.subr.mxu0 %v471
          %614 = vmatpush1.msra.mxu0 %v470
          %615 = vmatprep.subr.mxu0 %v474
          %616 = vmatpush1.msra.mxu0 %v473
          %617 = vmatprep.subr.mxu0 %v477
          %618 = vmatpush1.msra.mxu0 %v476
          %619 = vmatprep.subr.mxu0 %v480
          %620 = vmatpush1.msra.mxu0 %v479
          %621 = vmatprep.subr.mxu0 %v483
          %622 = vmatpush1.msra.mxu0 %v482
          %623 = vmatprep.subr.mxu0 %v486
          %624 = vmatpush1.msra.mxu0 %v485
          %625 = vmatprep.subr.mxu0 %v489
          %626 = vmatpush1.msra.mxu0 %v488
          %627 = vmatprep.subr.mxu0 0.0
          %628 = vmatpush1.msra.mxu0 0.0
          %629 = vmatprep.subr.mxu0 0.0
          %630 = vmatpush1.msra.mxu0 0.0
          %631 = vmatprep.subr.mxu0 0.0
          %632 = vmatpush1.msra.mxu0 0.0
          %633 = vmatprep.subr.mxu0 0.0
          %634 = vmatpush1.msra.mxu0 0.0
          %635 = vmatprep.subr.mxu0 0.0
          %636 = vmatpush1.msra.mxu0 0.0
          %637 = vmatprep.subr.mxu0 0.0
          %638 = vmatpush1.msra.mxu0 0.0
          %639 = vmatprep.subr.mxu0 0.0
          %640 = vmatpush1.msra.mxu0 0.0
          %641 = vmatprep.subr.mxu0 0.0
          %642 = vmatpush1.msra.mxu0 0.0
          %643 = vmatprep.subr.mxu0 0.0
          %644 = vmatpush1.msra.mxu0 0.0
          %645 = vmatprep.subr.mxu0 0.0
          %646 = vmatpush1.msra.mxu0 0.0
          %647 = vmatprep.subr.mxu0 0.0
          %648 = vmatpush1.msra.mxu0 0.0
          %649 = vmatprep.subr.mxu0 0.0
          %650 = vmatpush1.msra.mxu0 0.0
          %651 = vmatprep.subr.mxu0 0.0
          %652 = vmatpush1.msra.mxu0 0.0
          %653 = vmatprep.subr.mxu0 0.0
          %654 = vmatpush1.msra.mxu0 0.0
          %655 = vmatprep.subr.mxu0 0.0
          %656 = vmatpush1.msra.mxu0 0.0
          %657 = vmatprep.subr.mxu0 0.0
          %658 = vmatpush1.msra.mxu0 0.0
          %659 = vmatprep.mubr.f32.mxu0 0.0
          %660 = vmatmul.mubr.f32.gmra.mrb[0].mxu0 %v504
          %v661 = vpop.f32.mrb[0].mxu0
          %v662 = vadd.f32 %v591, %v661
          %v663 = vpop.f32.mrb[0].mxu0
          %v664 = vadd.f32 %v593, %v663
          %665 = vdwg.mxu0
          %666 = vmatprep.subr.mxu0 0.0
          %667 = vmatpush1.msra.mxu0 %v349
          %668 = vmatprep.subr.mxu0 0.0
          %669 = vmatpush1.msra.mxu0 %v352
          %670 = vmatprep.subr.mxu0 0.0
          %671 = vmatpush1.msra.mxu0 %v355
          %672 = vmatprep.subr.mxu0 0.0
          %673 = vmatpush1.msra.mxu0 %v358
          %674 = vmatprep.subr.mxu0 0.0
          %675 = vmatpush1.msra.mxu0 %v361
          %676 = vmatprep.subr.mxu0 0.0
          %677 = vmatpush1.msra.mxu0 %v364
          %678 = vmatprep.subr.mxu0 0.0
          %679 = vmatpush1.msra.mxu0 %v367
          %680 = vmatprep.subr.mxu0 0.0
          %681 = vmatpush1.msra.mxu0 %v370
          %682 = vmatprep.subr.mxu0 0.0
          %683 = vmatpush1.msra.mxu0 %v373
          %684 = vmatprep.subr.mxu0 0.0
          %685 = vmatpush1.msra.mxu0 %v376
          %686 = vmatprep.subr.mxu0 0.0
          %687 = vmatpush1.msra.mxu0 %v379
          %688 = vmatprep.subr.mxu0 0.0
          %689 = vmatpush1.msra.mxu0 %v382
          %690 = vmatprep.subr.mxu0 0.0
          %691 = vmatpush1.msra.mxu0 %v385
          %692 = vmatprep.subr.mxu0 0.0
          %693 = vmatpush1.msra.mxu0 %v388
          %694 = vmatprep.subr.mxu0 0.0
          %695 = vmatpush1.msra.mxu0 %v391
          %696 = vmatprep.subr.mxu0 0.0
          %697 = vmatpush1.msra.mxu0 %v394
          %698 = vmatprep.subr.mxu0 0.0
          %699 = vmatpush1.msra.mxu0 %v397
          %700 = vmatprep.subr.mxu0 0.0
          %701 = vmatpush1.msra.mxu0 %v400
          %702 = vmatprep.subr.mxu0 0.0
          %703 = vmatpush1.msra.mxu0 %v403
          %704 = vmatprep.subr.mxu0 0.0
          %705 = vmatpush1.msra.mxu0 %v406
          %706 = vmatprep.subr.mxu0 0.0
          %707 = vmatpush1.msra.mxu0 %v409
          %708 = vmatprep.subr.mxu0 0.0
          %709 = vmatpush1.msra.mxu0 %v412
          %710 = vmatprep.subr.mxu0 0.0
          %711 = vmatpush1.msra.mxu0 %v415
          %712 = vmatprep.subr.mxu0 0.0
          %713 = vmatpush1.msra.mxu0 %v418
          %714 = vmatprep.subr.mxu0 0.0
          %715 = vmatpush1.msra.mxu0 %v421
          %716 = vmatprep.subr.mxu0 0.0
          %717 = vmatpush1.msra.mxu0 %v424
          %718 = vmatprep.subr.mxu0 0.0
          %719 = vmatpush1.msra.mxu0 %v427
          %720 = vmatprep.subr.mxu0 0.0
          %721 = vmatpush1.msra.mxu0 %v430
          %722 = vmatprep.subr.mxu0 0.0
          %723 = vmatpush1.msra.mxu0 %v433
          %724 = vmatprep.subr.mxu0 0.0
          %725 = vmatpush1.msra.mxu0 %v436
          %726 = vmatprep.subr.mxu0 0.0
          %727 = vmatpush1.msra.mxu0 %v439
          %728 = vmatprep.subr.mxu0 0.0
          %729 = vmatpush1.msra.mxu0 %v442
          %730 = vmatprep.mubr.f32.mxu0 %v500
          %731 = vmatmul.mubr.f32.gmra.mrb[0].mxu0 %v496
          %v732 = vpop.f32.mrb[0].mxu0
          %v733 = vadd.f32 %v520, %v732
          %v734 = vpop.f32.mrb[0].mxu0
          %735 = vdwg.mxu0
          %736 = vmatprep.subr.mxu0 0.0
          %737 = vmatpush1.msra.mxu0 %v445
          %738 = vmatprep.subr.mxu0 0.0
          %739 = vmatpush1.msra.mxu0 %v448
          %740 = vmatprep.subr.mxu0 0.0
          %741 = vmatpush1.msra.mxu0 %v451
          %742 = vmatprep.subr.mxu0 0.0
          %743 = vmatpush1.msra.mxu0 %v454
          %744 = vmatprep.subr.mxu0 0.0
          %745 = vmatpush1.msra.mxu0 %v457
          %746 = vmatprep.subr.mxu0 0.0
          %747 = vmatpush1.msra.mxu0 %v460
          %748 = vmatprep.subr.mxu0 0.0
          %749 = vmatpush1.msra.mxu0 %v463
          %750 = vmatprep.subr.mxu0 0.0
          %751 = vmatpush1.msra.mxu0 %v466
          %752 = vmatprep.subr.mxu0 0.0
          %753 = vmatpush1.msra.mxu0 %v469
          %754 = vmatprep.subr.mxu0 0.0
          %755 = vmatpush1.msra.mxu0 %v472
          %756 = vmatprep.subr.mxu0 0.0
          %757 = vmatpush1.msra.mxu0 %v475
          %758 = vmatprep.subr.mxu0 0.0
          %759 = vmatpush1.msra.mxu0 %v478
          %760 = vmatprep.subr.mxu0 0.0
          %761 = vmatpush1.msra.mxu0 %v481
          %762 = vmatprep.subr.mxu0 0.0
          %763 = vmatpush1.msra.mxu0 %v484
          %764 = vmatprep.subr.mxu0 0.0
          %765 = vmatpush1.msra.mxu0 %v487
          %766 = vmatprep.subr.mxu0 0.0
          %767 = vmatpush1.msra.mxu0 %v490
          %768 = vmatprep.subr.mxu0 0.0
          %769 = vmatpush1.msra.mxu0 0.0
          %770 = vmatprep.subr.mxu0 0.0
          %771 = vmatpush1.msra.mxu0 0.0
          %772 = vmatprep.subr.mxu0 0.0
          %773 = vmatpush1.msra.mxu0 0.0
          %774 = vmatprep.subr.mxu0 0.0
          %775 = vmatpush1.msra.mxu0 0.0
          %776 = vmatprep.subr.mxu0 0.0
          %777 = vmatpush1.msra.mxu0 0.0
          %778 = vmatprep.subr.mxu0 0.0
          %779 = vmatpush1.msra.mxu0 0.0
          %780 = vmatprep.subr.mxu0 0.0
          %781 = vmatpush1.msra.mxu0 0.0
          %782 = vmatprep.subr.mxu0 0.0
          %783 = vmatpush1.msra.mxu0 0.0
          %784 = vmatprep.subr.mxu0 0.0
          %785 = vmatpush1.msra.mxu0 0.0
          %786 = vmatprep.subr.mxu0 0.0
          %787 = vmatpush1.msra.mxu0 0.0
          %788 = vmatprep.subr.mxu0 0.0
          %789 = vmatpush1.msra.mxu0 0.0
          %790 = vmatprep.subr.mxu0 0.0
          %791 = vmatpush1.msra.mxu0 0.0
          %792 = vmatprep.subr.mxu0 0.0
          %793 = vmatpush1.msra.mxu0 0.0
          %794 = vmatprep.subr.mxu0 0.0
          %795 = vmatpush1.msra.mxu0 0.0
          %796 = vmatprep.subr.mxu0 0.0
          %797 = vmatpush1.msra.mxu0 0.0
          %798 = vmatprep.subr.mxu0 0.0
          %799 = vmatpush1.msra.mxu0 0.0
          %800 = vmatprep.mubr.f32.mxu0 0.0
          %801 = vmatmul.mubr.f32.gmra.mrb[0].mxu0 %v504
          %v802 = vpop.f32.mrb[0].mxu0
          %v803 = vadd.f32 %v733, %v802
          %v804 = vpop.f32.mrb[0].mxu0
          %805 = vdwg.mxu0
          %v806 = vmul.f32 %v662, 1.442695
          %v807 = vpow.pop %v806
          %v808 = vmul.f32 %v664, 1.442695
          %v809 = vpow.pop %v808
          %v810 = vmul.f32 %v803, 1.442695
          %v811 = vpow.pop %v810
          %v812 = vld [vmem:[%s3] sm:$0xff]
          %v813 = vld [vmem:[%s3 + $0x8] sm:$0xff]
          %v814 = vld [vmem:[%s3 + $0x10] sm:$0xff]
          %v815 = vld [vmem:[%s3 + $0x18] sm:$0xff]
          %v816 = vld [vmem:[%s3 + $0x20] sm:$0xff]
          %v817 = vld [vmem:[%s3 + $0x28] sm:$0xff]
          %v818 = vld [vmem:[%s3 + $0x30] sm:$0xff]
          %v819 = vld [vmem:[%s3 + $0x38] sm:$0xff]
          %v820 = vld [vmem:[%s3 + $0x40] sm:$0xff]
          %v821 = vld [vmem:[%s3 + $0x48] sm:$0xff]
          %v822 = vld [vmem:[%s3 + $0x50] sm:$0xff]
          %v823 = vld [vmem:[%s3 + $0x58] sm:$0xff]
          %v824 = vld [vmem:[%s3 + $0x60] sm:$0xff]
          %v825 = vld [vmem:[%s3 + $0x68] sm:$0xff]
          %v826 = vld [vmem:[%s3 + $0x70] sm:$0xff]
          %v827 = vld [vmem:[%s3 + $0x78] sm:$0xff]
          %v828 = vld [vmem:[%s3 + $0x80] sm:$0xff]
          %v829 = vld [vmem:[%s3 + $0x88] sm:$0xff]
          %v830 = vld [vmem:[%s3 + $0x90] sm:$0xff]
          %v831 = vld [vmem:[%s3 + $0x98] sm:$0xff]
          %v832 = vld [vmem:[%s3 + $0xa0] sm:$0xff]
          %v833 = vld [vmem:[%s3 + $0xa8] sm:$0xff]
          %v834 = vld [vmem:[%s3 + $0xb0] sm:$0xff]
          %v835 = vld [vmem:[%s3 + $0xb8] sm:$0xff]
          %v836 = vld [vmem:[%s3 + $0xc0] sm:$0xff]
          %v837 = vld [vmem:[%s3 + $0xc8] sm:$0xff]
          %v838 = vld [vmem:[%s3 + $0xd0] sm:$0xff]
          %v839 = vld [vmem:[%s3 + $0xd8] sm:$0xff]
          %v840 = vld [vmem:[%s3 + $0xe0] sm:$0xff]
          %v841 = vld [vmem:[%s3 + $0xe8] sm:$0xff]
          %v842 = vld [vmem:[%s3 + $0xf0] sm:$0xff]
          %v843 = vld [vmem:[%s3 + $0xf8] sm:$0xff]
          %v844 = vld [vmem:[%s3 + $0x100] sm:$0xff]
          %v845 = vld [vmem:[%s3 + $0x108] sm:$0xff]
          %v846 = vld [vmem:[%s3 + $0x110] sm:$0xff]
          %v847 = vld [vmem:[%s3 + $0x118] sm:$0xff]
          %v848 = vld [vmem:[%s3 + $0x120] sm:$0xff]
          %v849 = vld [vmem:[%s3 + $0x128] sm:$0xff]
          %v850 = vld [vmem:[%s3 + $0x130] sm:$0xff]
          %v851 = vld [vmem:[%s3 + $0x138] sm:$0xff]
          %v852 = vld [vmem:[%s3 + $0x140] sm:$0xff]
          %v853 = vld [vmem:[%s3 + $0x148] sm:$0xff]
          %v854 = vld [vmem:[%s3 + $0x150] sm:$0xff]
          %v855 = vld [vmem:[%s3 + $0x158] sm:$0xff]
          %v856 = vld [vmem:[%s3 + $0x160] sm:$0xff]
          %v857 = vld [vmem:[%s3 + $0x168] sm:$0xff]
          %v858 = vld [vmem:[%s3 + $0x170] sm:$0xff]
          %v859 = vld [vmem:[%s3 + $0x178] sm:$0xff]
          %860 = vmatprep.subr.mxu0 0.0
          %861 = vmatpush1.msra.mxu0 %v812
          %862 = vmatprep.subr.mxu0 0.0
          %863 = vmatpush1.msra.mxu0 %v813
          %864 = vmatprep.subr.mxu0 0.0
          %865 = vmatpush1.msra.mxu0 %v814
          %866 = vmatprep.subr.mxu0 0.0
          %867 = vmatpush1.msra.mxu0 %v815
          %868 = vmatprep.subr.mxu0 0.0
          %869 = vmatpush1.msra.mxu0 %v816
          %870 = vmatprep.subr.mxu0 0.0
          %871 = vmatpush1.msra.mxu0 %v817
          %872 = vmatprep.subr.mxu0 0.0
          %873 = vmatpush1.msra.mxu0 %v818
          %874 = vmatprep.subr.mxu0 0.0
          %875 = vmatpush1.msra.mxu0 %v819
          %876 = vmatprep.subr.mxu0 0.0
          %877 = vmatpush1.msra.mxu0 %v820
          %878 = vmatprep.subr.mxu0 0.0
          %879 = vmatpush1.msra.mxu0 %v821
          %880 = vmatprep.subr.mxu0 0.0
          %881 = vmatpush1.msra.mxu0 %v822
          %882 = vmatprep.subr.mxu0 0.0
          %883 = vmatpush1.msra.mxu0 %v823
          %884 = vmatprep.subr.mxu0 0.0
          %885 = vmatpush1.msra.mxu0 %v824
          %886 = vmatprep.subr.mxu0 0.0
          %887 = vmatpush1.msra.mxu0 %v825
          %888 = vmatprep.subr.mxu0 0.0
          %889 = vmatpush1.msra.mxu0 %v826
          %890 = vmatprep.subr.mxu0 0.0
          %891 = vmatpush1.msra.mxu0 %v827
          %892 = vmatprep.subr.mxu0 0.0
          %893 = vmatpush1.msra.mxu0 %v828
          %894 = vmatprep.subr.mxu0 0.0
          %895 = vmatpush1.msra.mxu0 %v829
          %896 = vmatprep.subr.mxu0 0.0
          %897 = vmatpush1.msra.mxu0 %v830
          %898 = vmatprep.subr.mxu0 0.0
          %899 = vmatpush1.msra.mxu0 %v831
          %900 = vmatprep.subr.mxu0 0.0
          %901 = vmatpush1.msra.mxu0 %v832
          %902 = vmatprep.subr.mxu0 0.0
          %903 = vmatpush1.msra.mxu0 %v833
          %904 = vmatprep.subr.mxu0 0.0
          %905 = vmatpush1.msra.mxu0 %v834
          %906 = vmatprep.subr.mxu0 0.0
          %907 = vmatpush1.msra.mxu0 %v835
          %908 = vmatprep.subr.mxu0 0.0
          %909 = vmatpush1.msra.mxu0 %v836
          %910 = vmatprep.subr.mxu0 0.0
          %911 = vmatpush1.msra.mxu0 %v837
          %912 = vmatprep.subr.mxu0 0.0
          %913 = vmatpush1.msra.mxu0 %v838
          %914 = vmatprep.subr.mxu0 0.0
          %915 = vmatpush1.msra.mxu0 %v839
          %916 = vmatprep.subr.mxu0 0.0
          %917 = vmatpush1.msra.mxu0 %v840
          %918 = vmatprep.subr.mxu0 0.0
          %919 = vmatpush1.msra.mxu0 %v841
          %920 = vmatprep.subr.mxu0 0.0
          %921 = vmatpush1.msra.mxu0 %v842
          %922 = vmatprep.subr.mxu0 0.0
          %923 = vmatpush1.msra.mxu0 %v843
          %924 = vmatprep.mubr.f32.mxu0 %v809
          %925 = vmatmul.mubr.f32.gmra.mrb[0].mxu0 %v807
          %v926 = vpop.f32.mrb[0].mxu0
          %v927 = vadd.f32 0.0, %v926
          %v928 = vpop.f32.mrb[0].mxu0
          %929 = vdwg.mxu0
          %930 = vmatprep.subr.mxu0 0.0
          %931 = vmatpush1.msra.mxu0 %v844
          %932 = vmatprep.subr.mxu0 0.0
          %933 = vmatpush1.msra.mxu0 %v845
          %934 = vmatprep.subr.mxu0 0.0
          %935 = vmatpush1.msra.mxu0 %v846
          %936 = vmatprep.subr.mxu0 0.0
          %937 = vmatpush1.msra.mxu0 %v847
          %938 = vmatprep.subr.mxu0 0.0
          %939 = vmatpush1.msra.mxu0 %v848
          %940 = vmatprep.subr.mxu0 0.0
          %941 = vmatpush1.msra.mxu0 %v849
          %942 = vmatprep.subr.mxu0 0.0
          %943 = vmatpush1.msra.mxu0 %v850
          %944 = vmatprep.subr.mxu0 0.0
          %945 = vmatpush1.msra.mxu0 %v851
          %946 = vmatprep.subr.mxu0 0.0
          %947 = vmatpush1.msra.mxu0 %v852
          %948 = vmatprep.subr.mxu0 0.0
          %949 = vmatpush1.msra.mxu0 %v853
          %950 = vmatprep.subr.mxu0 0.0
          %951 = vmatpush1.msra.mxu0 %v854
          %952 = vmatprep.subr.mxu0 0.0
          %953 = vmatpush1.msra.mxu0 %v855
          %954 = vmatprep.subr.mxu0 0.0
          %955 = vmatpush1.msra.mxu0 %v856
          %956 = vmatprep.subr.mxu0 0.0
          %957 = vmatpush1.msra.mxu0 %v857
          %958 = vmatprep.subr.mxu0 0.0
          %959 = vmatpush1.msra.mxu0 %v858
          %960 = vmatprep.subr.mxu0 0.0
          %961 = vmatpush1.msra.mxu0 %v859
          %962 = vmatprep.subr.mxu0 0.0
          %963 = vmatpush1.msra.mxu0 0.0
          %964 = vmatprep.subr.mxu0 0.0
          %965 = vmatpush1.msra.mxu0 0.0
          %966 = vmatprep.subr.mxu0 0.0
          %967 = vmatpush1.msra.mxu0 0.0
          %968 = vmatprep.subr.mxu0 0.0
          %969 = vmatpush1.msra.mxu0 0.0
          %970 = vmatprep.subr.mxu0 0.0
          %971 = vmatpush1.msra.mxu0 0.0
          %972 = vmatprep.subr.mxu0 0.0
          %973 = vmatpush1.msra.mxu0 0.0
          %974 = vmatprep.subr.mxu0 0.0
          %975 = vmatpush1.msra.mxu0 0.0
          %976 = vmatprep.subr.mxu0 0.0
          %977 = vmatpush1.msra.mxu0 0.0
          %978 = vmatprep.subr.mxu0 0.0
          %979 = vmatpush1.msra.mxu0 0.0
          %980 = vmatprep.subr.mxu0 0.0
          %981 = vmatpush1.msra.mxu0 0.0
          %982 = vmatprep.subr.mxu0 0.0
          %983 = vmatpush1.msra.mxu0 0.0
          %984 = vmatprep.subr.mxu0 0.0
          %985 = vmatpush1.msra.mxu0 0.0
          %986 = vmatprep.subr.mxu0 0.0
          %987 = vmatpush1.msra.mxu0 0.0
          %988 = vmatprep.subr.mxu0 0.0
          %989 = vmatpush1.msra.mxu0 0.0
          %990 = vmatprep.subr.mxu0 0.0
          %991 = vmatpush1.msra.mxu0 0.0
          %992 = vmatprep.subr.mxu0 0.0
          %993 = vmatpush1.msra.mxu0 0.0
          %994 = vmatprep.mubr.f32.mxu0 0.0
          %995 = vmatmul.mubr.f32.gmra.mrb[0].mxu0 %v811
          %v996 = vpop.f32.mrb[0].mxu0
          %v997 = vadd.f32 %v927, %v996
          %v998 = vpop.f32.mrb[0].mxu0
          %999 = vdwg.mxu0
          %v1000 = vrcp.pop %v997
          %v1001 = vmul.f32 1.0, %v1000
          %v1002 = vld [vmem:[%s4] sm:$0xff]
          %v1003 = vld [vmem:[%s4 + $0x8] sm:$0xff]
          %v1004 = vld [vmem:[%s4 + $0x10] sm:$0xff]
          %v1005 = vld [vmem:[%s4 + $0x18] sm:$0xff]
          %v1006 = vld [vmem:[%s4 + $0x20] sm:$0xff]
          %v1007 = vld [vmem:[%s4 + $0x28] sm:$0xff]
          %v1008 = vld [vmem:[%s4 + $0x30] sm:$0xff]
          %v1009 = vld [vmem:[%s4 + $0x38] sm:$0xff]
          %v1010 = vld [vmem:[%s4 + $0x40] sm:$0xff]
          %v1011 = vld [vmem:[%s4 + $0x48] sm:$0xff]
          %v1012 = vld [vmem:[%s4 + $0x50] sm:$0xff]
          %v1013 = vld [vmem:[%s4 + $0x58] sm:$0xff]
          %vm1014 = vcmask 261120
          %v1016 = vsel %vm1014, %v1001, 0
          %1018 = vmatprep.subr.mxu0 %v1003
          %1019 = vmatpush1.msra.mxu0 %v1002
          %1020 = vmatprep.subr.mxu0 %v1006
          %1021 = vmatpush1.msra.mxu0 %v1005
          %1022 = vmatprep.subr.mxu0 %v1009
          %1023 = vmatpush1.msra.mxu0 %v1008
          %1024 = vmatprep.subr.mxu0 %v1012
          %1025 = vmatpush1.msra.mxu0 %v1011
          %1026 = vmatprep.subr.mxu0 0.0
          %1027 = vmatpush1.msra.mxu0 0.0
          %1028 = vmatprep.subr.mxu0 0.0
          %1029 = vmatpush1.msra.mxu0 0.0
          %1030 = vmatprep.subr.mxu0 0.0
          %1031 = vmatpush1.msra.mxu0 0.0
          %1032 = vmatprep.subr.mxu0 0.0
          %1033 = vmatpush1.msra.mxu0 0.0
          %1034 = vmatprep.subr.mxu0 0.0
          %1035 = vmatpush1.msra.mxu0 0.0
          %1036 = vmatprep.subr.mxu0 0.0
          %1037 = vmatpush1.msra.mxu0 0.0
          %1038 = vmatprep.subr.mxu0 0.0
          %1039 = vmatpush1.msra.mxu0 0.0
          %1040 = vmatprep.subr.mxu0 0.0
          %1041 = vmatpush1.msra.mxu0 0.0
          %1042 = vmatprep.subr.mxu0 0.0
          %1043 = vmatpush1.msra.mxu0 0.0
          %1044 = vmatprep.subr.mxu0 0.0
          %1045 = vmatpush1.msra.mxu0 0.0
          %1046 = vmatprep.subr.mxu0 0.0
          %1047 = vmatpush1.msra.mxu0 0.0
          %1048 = vmatprep.subr.mxu0 0.0
          %1049 = vmatpush1.msra.mxu0 0.0
          %1050 = vmatprep.subr.mxu0 0.0
          %1051 = vmatpush1.msra.mxu0 0.0
          %1052 = vmatprep.subr.mxu0 0.0
          %1053 = vmatpush1.msra.mxu0 0.0
          %1054 = vmatprep.subr.mxu0 0.0
          %1055 = vmatpush1.msra.mxu0 0.0
          %1056 = vmatprep.subr.mxu0 0.0
          %1057 = vmatpush1.msra.mxu0 0.0
          %1058 = vmatprep.subr.mxu0 0.0
          %1059 = vmatpush1.msra.mxu0 0.0
          %1060 = vmatprep.subr.mxu0 0.0
          %1061 = vmatpush1.msra.mxu0 0.0
          %1062 = vmatprep.subr.mxu0 0.0
          %1063 = vmatpush1.msra.mxu0 0.0
          %1064 = vmatprep.subr.mxu0 0.0
          %1065 = vmatpush1.msra.mxu0 0.0
          %1066 = vmatprep.subr.mxu0 0.0
          %1067 = vmatpush1.msra.mxu0 0.0
          %1068 = vmatprep.subr.mxu0 0.0
          %1069 = vmatpush1.msra.mxu0 0.0
          %1070 = vmatprep.subr.mxu0 0.0
          %1071 = vmatpush1.msra.mxu0 0.0
          %1072 = vmatprep.subr.mxu0 0.0
          %1073 = vmatpush1.msra.mxu0 0.0
          %1074 = vmatprep.subr.mxu0 0.0
          %1075 = vmatpush1.msra.mxu0 0.0
          %1076 = vmatprep.subr.mxu0 0.0
          %1077 = vmatpush1.msra.mxu0 0.0
          %1078 = vmatprep.subr.mxu0 0.0
          %1079 = vmatpush1.msra.mxu0 0.0
          %1080 = vmatprep.subr.mxu0 0.0
          %1081 = vmatpush1.msra.mxu0 0.0
          %1082 = vmatprep.mubr.f32.mxu0 0.0
          %1083 = vmatmul.mubr.f32.gmra.mrb[0].mxu0 %v1016
          %v1084 = vpop.f32.mrb[0].mxu0
          %v1085 = vadd.f32 0.0, %v1084
          %v1086 = vpop.f32.mrb[0].mxu0
          %v1087 = vadd.f32 0.0, %v1086
          %1088 = vdwg.mxu0
          %1089 = vmatprep.subr.mxu0 0.0
          %1090 = vmatpush1.msra.mxu0 %v1004
          %1091 = vmatprep.subr.mxu0 0.0
          %1092 = vmatpush1.msra.mxu0 %v1007
          %1093 = vmatprep.subr.mxu0 0.0
          %1094 = vmatpush1.msra.mxu0 %v1010
          %1095 = vmatprep.subr.mxu0 0.0
          %1096 = vmatpush1.msra.mxu0 %v1013
          %1097 = vmatprep.subr.mxu0 0.0
          %1098 = vmatpush1.msra.mxu0 0.0
          %1099 = vmatprep.subr.mxu0 0.0
          %1100 = vmatpush1.msra.mxu0 0.0
          %1101 = vmatprep.subr.mxu0 0.0
          %1102 = vmatpush1.msra.mxu0 0.0
          %1103 = vmatprep.subr.mxu0 0.0
          %1104 = vmatpush1.msra.mxu0 0.0
          %1105 = vmatprep.subr.mxu0 0.0
          %1106 = vmatpush1.msra.mxu0 0.0
          %1107 = vmatprep.subr.mxu0 0.0
          %1108 = vmatpush1.msra.mxu0 0.0
          %1109 = vmatprep.subr.mxu0 0.0
          %1110 = vmatpush1.msra.mxu0 0.0
          %1111 = vmatprep.subr.mxu0 0.0
          %1112 = vmatpush1.msra.mxu0 0.0
          %1113 = vmatprep.subr.mxu0 0.0
          %1114 = vmatpush1.msra.mxu0 0.0
          %1115 = vmatprep.subr.mxu0 0.0
          %1116 = vmatpush1.msra.mxu0 0.0
          %1117 = vmatprep.subr.mxu0 0.0
          %1118 = vmatpush1.msra.mxu0 0.0
          %1119 = vmatprep.subr.mxu0 0.0
          %1120 = vmatpush1.msra.mxu0 0.0
          %1121 = vmatprep.subr.mxu0 0.0
          %1122 = vmatpush1.msra.mxu0 0.0
          %1123 = vmatprep.subr.mxu0 0.0
          %1124 = vmatpush1.msra.mxu0 0.0
          %1125 = vmatprep.subr.mxu0 0.0
          %1126 = vmatpush1.msra.mxu0 0.0
          %1127 = vmatprep.subr.mxu0 0.0
          %1128 = vmatpush1.msra.mxu0 0.0
          %1129 = vmatprep.subr.mxu0 0.0
          %1130 = vmatpush1.msra.mxu0 0.0
          %1131 = vmatprep.subr.mxu0 0.0
          %1132 = vmatpush1.msra.mxu0 0.0
          %1133 = vmatprep.subr.mxu0 0.0
          %1134 = vmatpush1.msra.mxu0 0.0
          %1135 = vmatprep.subr.mxu0 0.0
          %1136 = vmatpush1.msra.mxu0 0.0
          %1137 = vmatprep.subr.mxu0 0.0
          %1138 = vmatpush1.msra.mxu0 0.0
          %1139 = vmatprep.subr.mxu0 0.0
          %1140 = vmatpush1.msra.mxu0 0.0
          %1141 = vmatprep.subr.mxu0 0.0
          %1142 = vmatpush1.msra.mxu0 0.0
          %1143 = vmatprep.subr.mxu0 0.0
          %1144 = vmatpush1.msra.mxu0 0.0
          %1145 = vmatprep.subr.mxu0 0.0
          %1146 = vmatpush1.msra.mxu0 0.0
          %1147 = vmatprep.subr.mxu0 0.0
          %1148 = vmatpush1.msra.mxu0 0.0
          %1149 = vmatprep.subr.mxu0 0.0
          %1150 = vmatpush1.msra.mxu0 0.0
          %1151 = vmatprep.subr.mxu0 0.0
          %1152 = vmatpush1.msra.mxu0 0.0
          %1153 = vmatprep.mubr.f32.mxu0 0.0
          %1154 = vmatmul.mubr.f32.gmra.mrb[0].mxu0 %v1016
          %v1155 = vpop.f32.mrb[0].mxu0
          %v1156 = vadd.f32 0.0, %v1155
          %v1157 = vpop.f32.mrb[0].mxu0
          %1158 = vdwg.mxu0
          %v1159 = vmul.f32 %v807, %v1085
          %v1160 = vmul.f32 %v809, %v1087
          %v1161 = vmul.f32 %v811, %v1156
          %v1162 = vld [vmem:[#allocation2] sm:$0x7]
          %v1163 = vadd.f32 %v1159, 0.0
          %v1164 = vadd.f32 %v1160, 0.0
          %v1165 = vadd.f32 %v1161, 0.0
          %v1169 = vcombine.low %v1163, %v1164
          %v1171 = vunpack.c.l.s4 1966171168
          %v1172 = vunpack.c.0.s8 %v1171
          %v1173 = vlaneseq
          %v1174 = vshrl.u32 %v1173, 7
          %v1175 = vsub.s32 %v1172, %v1174
          %v1176 = vrot.slane %v1169, %v1175
          %v1178 = vunpack.c.l.s4 1966171168
          %v1179 = vunpack.c.0.s8 %v1178
          %v1180 = vlaneseq
          %v1181 = vshrl.u32 %v1180, 7
          %v1182 = vsub.s32 %v1179, %v1181
          %v1183 = vrot.slane %v1165, %v1182
          %v1184 = vcombine.low %v1176, %v1183
          %v1186 = vunpack.c.l.s4 1966171168
          %v1187 = vunpack.c.0.s8 %v1186
          %v1188 = vlaneseq
          %v1189 = vshrl.u32 %v1188, 7
          %v1190 = vsub.s32 %v1187, %v1189
          %v1191 = vrot.slane %v1184, %v1190
          %v1193 = vadd.f32 %v1162, %v1191
          %v1194 = vlaneseq
          %vm1195 = vcmp.ge.s32.totalorder %v1194, 0
          %vm1196 = vcmp.lt.s32.totalorder %v1194, 384
          %vm1197 = vmand %vm1195, %vm1196
          %1198 = vst.msk [vmem:[#allocation2] sm:$0x7] %vm1197, %v1193
        $region64: #{tpu_custom_call.1} parent=51 // pred_fallthru
          _
        %p1199 = scmp.eq.s32.totalorder %s27, 1
        %p1200 = pnand %p1199, %p332
        %p1201 = pneg %p1200
        // Predicated region
        $region65: #{tpu_custom_call.1} parent=51 // pred_check
          _
        $region66: #{tpu_custom_call.1} parent=51 // pred_check_branch
          %1203 = sbr.rel (%p1200) target = $region68
        $region67: #{tpu_custom_call.1} parent=51 // pred_region
          %v1204 = vld [vmem:[#allocation2] sm:$0x7]
          %v1205 = vld [vmem:[%s5] sm:$0xff]
          %v1206 = vld [vmem:[%s5 + $0x8] sm:$0xff]
          %v1207 = vld [vmem:[%s5 + $0x10] sm:$0xff]
          %v1208 = vld [vmem:[%s5 + $0x18] sm:$0xff]
          %v1209 = vld [vmem:[%s5 + $0x20] sm:$0xff]
          %v1210 = vld [vmem:[%s5 + $0x28] sm:$0xff]
          %v1211 = vld [vmem:[%s5 + $0x30] sm:$0xff]
          %v1212 = vld [vmem:[%s5 + $0x38] sm:$0xff]
          %v1213 = vld [vmem:[%s5 + $0x40] sm:$0xff]
          %v1214 = vld [vmem:[%s5 + $0x48] sm:$0xff]
          %v1215 = vld [vmem:[%s5 + $0x50] sm:$0xff]
          %v1216 = vld [vmem:[%s5 + $0x58] sm:$0xff]
          %v1217 = vld [vmem:[%s5 + $0x60] sm:$0xff]
          %v1218 = vld [vmem:[%s5 + $0x68] sm:$0xff]
          %v1219 = vld [vmem:[%s5 + $0x70] sm:$0xff]
          %v1220 = vld [vmem:[%s5 + $0x78] sm:$0xff]
          %v1221 = vld [vmem:[%s5 + $0x80] sm:$0xff]
          %v1222 = vld [vmem:[%s5 + $0x88] sm:$0xff]
          %v1223 = vld [vmem:[%s5 + $0x90] sm:$0xff]
          %v1224 = vld [vmem:[%s5 + $0x98] sm:$0xff]
          %v1225 = vld [vmem:[%s5 + $0xa0] sm:$0xff]
          %v1226 = vld [vmem:[%s5 + $0xa8] sm:$0xff]
          %v1227 = vld [vmem:[%s5 + $0xb0] sm:$0xff]
          %v1228 = vld [vmem:[%s5 + $0xb8] sm:$0xff]
          %v1229 = vld [vmem:[%s5 + $0xc0] sm:$0xff]
          %v1230 = vld [vmem:[%s5 + $0xc8] sm:$0xff]
          %v1231 = vld [vmem:[%s5 + $0xd0] sm:$0xff]
          %v1232 = vld [vmem:[%s5 + $0xd8] sm:$0xff]
          %v1233 = vld [vmem:[%s5 + $0xe0] sm:$0xff]
          %v1234 = vld [vmem:[%s5 + $0xe8] sm:$0xff]
          %v1235 = vld [vmem:[%s5 + $0xf0] sm:$0xff]
          %v1236 = vld [vmem:[%s5 + $0xf8] sm:$0xff]
          %v1237 = vld [vmem:[%s5 + $0x100] sm:$0xff]
          %v1238 = vld [vmem:[%s5 + $0x108] sm:$0xff]
          %v1239 = vld [vmem:[%s5 + $0x110] sm:$0xff]
          %v1240 = vld [vmem:[%s5 + $0x118] sm:$0xff]
          %v1241 = vld [vmem:[%s5 + $0x120] sm:$0xff]
          %v1242 = vld [vmem:[%s5 + $0x128] sm:$0xff]
          %v1243 = vld [vmem:[%s5 + $0x130] sm:$0xff]
          %v1244 = vld [vmem:[%s5 + $0x138] sm:$0xff]
          %v1245 = vld [vmem:[%s5 + $0x140] sm:$0xff]
          %v1246 = vld [vmem:[%s5 + $0x148] sm:$0xff]
          %v1247 = vld [vmem:[%s5 + $0x150] sm:$0xff]
          %v1248 = vld [vmem:[%s5 + $0x158] sm:$0xff]
          %v1249 = vld [vmem:[%s5 + $0x160] sm:$0xff]
          %v1250 = vld [vmem:[%s5 + $0x168] sm:$0xff]
          %v1251 = vld [vmem:[%s5 + $0x170] sm:$0xff]
          %v1252 = vld [vmem:[%s5 + $0x178] sm:$0xff]
          %v1254 = vlaneseq
          %v1255 = vshrl.u32 %v1254, 7
          %v1256 = vsub.s32 0, %v1255
          %v1257 = vrot.slane %v1204, %v1256
          %v1258 = vlaneseq
          %v1259 = vshrl.u32 %v1258, 7
          %v1260 = vsub.s32 1, %v1259
          %v1261 = vrot.slane %v1204, %v1260
          %v1262 = vlaneseq
          %v1263 = vshrl.u32 %v1262, 7
          %v1264 = vsub.s32 2, %v1263
          %v1265 = vrot.slane %v1204, %v1264
          %1269 = vmatprep.subr.mxu0 0.0
          %1270 = vmatpush1.msra.mxu0 %v1205
          %1271 = vmatprep.subr.mxu0 0.0
          %1272 = vmatpush1.msra.mxu0 %v1206
          %1273 = vmatprep.subr.mxu0 0.0
          %1274 = vmatpush1.msra.mxu0 %v1207
          %1275 = vmatprep.subr.mxu0 0.0
          %1276 = vmatpush1.msra.mxu0 %v1208
          %1277 = vmatprep.subr.mxu0 0.0
          %1278 = vmatpush1.msra.mxu0 %v1209
          %1279 = vmatprep.subr.mxu0 0.0
          %1280 = vmatpush1.msra.mxu0 %v1210
          %1281 = vmatprep.subr.mxu0 0.0
          %1282 = vmatpush1.msra.mxu0 %v1211
          %1283 = vmatprep.subr.mxu0 0.0
          %1284 = vmatpush1.msra.mxu0 %v1212
          %1285 = vmatprep.subr.mxu0 0.0
          %1286 = vmatpush1.msra.mxu0 %v1213
          %1287 = vmatprep.subr.mxu0 0.0
          %1288 = vmatpush1.msra.mxu0 %v1214
          %1289 = vmatprep.subr.mxu0 0.0
          %1290 = vmatpush1.msra.mxu0 %v1215
          %1291 = vmatprep.subr.mxu0 0.0
          %1292 = vmatpush1.msra.mxu0 %v1216
          %1293 = vmatprep.subr.mxu0 0.0
          %1294 = vmatpush1.msra.mxu0 %v1217
          %1295 = vmatprep.subr.mxu0 0.0
          %1296 = vmatpush1.msra.mxu0 %v1218
          %1297 = vmatprep.subr.mxu0 0.0
          %1298 = vmatpush1.msra.mxu0 %v1219
          %1299 = vmatprep.subr.mxu0 0.0
          %1300 = vmatpush1.msra.mxu0 %v1220
          %1301 = vmatprep.subr.mxu0 0.0
          %1302 = vmatpush1.msra.mxu0 %v1221
          %1303 = vmatprep.subr.mxu0 0.0
          %1304 = vmatpush1.msra.mxu0 %v1222
          %1305 = vmatprep.subr.mxu0 0.0
          %1306 = vmatpush1.msra.mxu0 %v1223
          %1307 = vmatprep.subr.mxu0 0.0
          %1308 = vmatpush1.msra.mxu0 %v1224
          %1309 = vmatprep.subr.mxu0 0.0
          %1310 = vmatpush1.msra.mxu0 %v1225
          %1311 = vmatprep.subr.mxu0 0.0
          %1312 = vmatpush1.msra.mxu0 %v1226
          %1313 = vmatprep.subr.mxu0 0.0
          %1314 = vmatpush1.msra.mxu0 %v1227
          %1315 = vmatprep.subr.mxu0 0.0
          %1316 = vmatpush1.msra.mxu0 %v1228
          %1317 = vmatprep.subr.mxu0 0.0
          %1318 = vmatpush1.msra.mxu0 %v1229
          %1319 = vmatprep.subr.mxu0 0.0
          %1320 = vmatpush1.msra.mxu0 %v1230
          %1321 = vmatprep.subr.mxu0 0.0
          %1322 = vmatpush1.msra.mxu0 %v1231
          %1323 = vmatprep.subr.mxu0 0.0
          %1324 = vmatpush1.msra.mxu0 %v1232
          %1325 = vmatprep.subr.mxu0 0.0
          %1326 = vmatpush1.msra.mxu0 %v1233
          %1327 = vmatprep.subr.mxu0 0.0
          %1328 = vmatpush1.msra.mxu0 %v1234
          %1329 = vmatprep.subr.mxu0 0.0
          %1330 = vmatpush1.msra.mxu0 %v1235
          %1331 = vmatprep.subr.mxu0 0.0
          %1332 = vmatpush1.msra.mxu0 %v1236
          %1333 = vmatprep.mubr.f32.mxu0 %v1261
          %1334 = vmatmul.mubr.f32.gmra.mrb[0].mxu0 %v1257
          %v1335 = vpop.f32.mrb[0].mxu0
          %v1336 = vadd.f32 0.0, %v1335
          %v1337 = vpop.f32.mrb[0].mxu0
          %1338 = vdwg.mxu0
          %1339 = vmatprep.subr.mxu0 0.0
          %1340 = vmatpush1.msra.mxu0 %v1237
          %1341 = vmatprep.subr.mxu0 0.0
          %1342 = vmatpush1.msra.mxu0 %v1238
          %1343 = vmatprep.subr.mxu0 0.0
          %1344 = vmatpush1.msra.mxu0 %v1239
          %1345 = vmatprep.subr.mxu0 0.0
          %1346 = vmatpush1.msra.mxu0 %v1240
          %1347 = vmatprep.subr.mxu0 0.0
          %1348 = vmatpush1.msra.mxu0 %v1241
          %1349 = vmatprep.subr.mxu0 0.0
          %1350 = vmatpush1.msra.mxu0 %v1242
          %1351 = vmatprep.subr.mxu0 0.0
          %1352 = vmatpush1.msra.mxu0 %v1243
          %1353 = vmatprep.subr.mxu0 0.0
          %1354 = vmatpush1.msra.mxu0 %v1244
          %1355 = vmatprep.subr.mxu0 0.0
          %1356 = vmatpush1.msra.mxu0 %v1245
          %1357 = vmatprep.subr.mxu0 0.0
          %1358 = vmatpush1.msra.mxu0 %v1246
          %1359 = vmatprep.subr.mxu0 0.0
          %1360 = vmatpush1.msra.mxu0 %v1247
          %1361 = vmatprep.subr.mxu0 0.0
          %1362 = vmatpush1.msra.mxu0 %v1248
          %1363 = vmatprep.subr.mxu0 0.0
          %1364 = vmatpush1.msra.mxu0 %v1249
          %1365 = vmatprep.subr.mxu0 0.0
          %1366 = vmatpush1.msra.mxu0 %v1250
          %1367 = vmatprep.subr.mxu0 0.0
          %1368 = vmatpush1.msra.mxu0 %v1251
          %1369 = vmatprep.subr.mxu0 0.0
          %1370 = vmatpush1.msra.mxu0 %v1252
          %1371 = vmatprep.subr.mxu0 0.0
          %1372 = vmatpush1.msra.mxu0 0.0
          %1373 = vmatprep.subr.mxu0 0.0
          %1374 = vmatpush1.msra.mxu0 0.0
          %1375 = vmatprep.subr.mxu0 0.0
          %1376 = vmatpush1.msra.mxu0 0.0
          %1377 = vmatprep.subr.mxu0 0.0
          %1378 = vmatpush1.msra.mxu0 0.0
          %1379 = vmatprep.subr.mxu0 0.0
          %1380 = vmatpush1.msra.mxu0 0.0
          %1381 = vmatprep.subr.mxu0 0.0
          %1382 = vmatpush1.msra.mxu0 0.0
          %1383 = vmatprep.subr.mxu0 0.0
          %1384 = vmatpush1.msra.mxu0 0.0
          %1385 = vmatprep.subr.mxu0 0.0
          %1386 = vmatpush1.msra.mxu0 0.0
          %1387 = vmatprep.subr.mxu0 0.0
          %1388 = vmatpush1.msra.mxu0 0.0
          %1389 = vmatprep.subr.mxu0 0.0
          %1390 = vmatpush1.msra.mxu0 0.0
          %1391 = vmatprep.subr.mxu0 0.0
          %1392 = vmatpush1.msra.mxu0 0.0
          %1393 = vmatprep.subr.mxu0 0.0
          %1394 = vmatpush1.msra.mxu0 0.0
          %1395 = vmatprep.subr.mxu0 0.0
          %1396 = vmatpush1.msra.mxu0 0.0
          %1397 = vmatprep.subr.mxu0 0.0
          %1398 = vmatpush1.msra.mxu0 0.0
          %1399 = vmatprep.subr.mxu0 0.0
          %1400 = vmatpush1.msra.mxu0 0.0
          %1401 = vmatprep.subr.mxu0 0.0
          %1402 = vmatpush1.msra.mxu0 0.0
          %1403 = vmatprep.mubr.f32.mxu0 0.0
          %1404 = vmatmul.mubr.f32.gmra.mrb[0].mxu0 %v1265
          %v1405 = vpop.f32.mrb[0].mxu0
          %v1406 = vadd.f32 %v1336, %v1405
          %v1407 = vpop.f32.mrb[0].mxu0
          %1408 = vdwg.mxu0
          %v1409 = vld [vmem:[%s6] sm:$0xff]
          %v1410 = vld [vmem:[%s6 + $0x8] sm:$0xff]
          %v1411 = vld [vmem:[%s6 + $0x10] sm:$0xff]
          %v1412 = vld [vmem:[%s6 + $0x18] sm:$0xf]
          %v1413 = vld [vmem:[%s6 + $0x20] sm:$0xf]
          %v1414 = vld [vmem:[%s6 + $0x28] sm:$0xf]
          %vm1415 = vcmask 97280
          %v1417 = vsel %vm1415, %v1406, 0
          %vm1419 = vcmask 1043456
          %v1421 = vsel %vm1419, %v1412, 0
          %v1424 = vsel %vm1419, %v1413, 0
          %v1427 = vsel %vm1419, %v1414, 0
          %1429 = vmatprep.subr.mxu0 %v1410
          %1430 = vmatpush1.msra.mxu0 %v1409
          %1431 = vmatprep.subr.mxu0 %v1424
          %1432 = vmatpush1.msra.mxu0 %v1421
          %1433 = vmatprep.subr.mxu0 0.0
          %1434 = vmatpush1.msra.mxu0 0.0
          %1435 = vmatprep.subr.mxu0 0.0
          %1436 = vmatpush1.msra.mxu0 0.0
          %1437 = vmatprep.subr.mxu0 0.0
          %1438 = vmatpush1.msra.mxu0 0.0
          %1439 = vmatprep.subr.mxu0 0.0
          %1440 = vmatpush1.msra.mxu0 0.0
          %1441 = vmatprep.subr.mxu0 0.0
          %1442 = vmatpush1.msra.mxu0 0.0
          %1443 = vmatprep.subr.mxu0 0.0
          %1444 = vmatpush1.msra.mxu0 0.0
          %1445 = vmatprep.subr.mxu0 0.0
          %1446 = vmatpush1.msra.mxu0 0.0
          %1447 = vmatprep.subr.mxu0 0.0
          %1448 = vmatpush1.msra.mxu0 0.0
          %1449 = vmatprep.subr.mxu0 0.0
          %1450 = vmatpush1.msra.mxu0 0.0
          %1451 = vmatprep.subr.mxu0 0.0
          %1452 = vmatpush1.msra.mxu0 0.0
          %1453 = vmatprep.subr.mxu0 0.0
          %1454 = vmatpush1.msra.mxu0 0.0
          %1455 = vmatprep.subr.mxu0 0.0
          %1456 = vmatpush1.msra.mxu0 0.0
          %1457 = vmatprep.subr.mxu0 0.0
          %1458 = vmatpush1.msra.mxu0 0.0
          %1459 = vmatprep.subr.mxu0 0.0
          %1460 = vmatpush1.msra.mxu0 0.0
          %1461 = vmatprep.subr.mxu0 0.0
          %1462 = vmatpush1.msra.mxu0 0.0
          %1463 = vmatprep.subr.mxu0 0.0
          %1464 = vmatpush1.msra.mxu0 0.0
          %1465 = vmatprep.subr.mxu0 0.0
          %1466 = vmatpush1.msra.mxu0 0.0
          %1467 = vmatprep.subr.mxu0 0.0
          %1468 = vmatpush1.msra.mxu0 0.0
          %1469 = vmatprep.subr.mxu0 0.0
          %1470 = vmatpush1.msra.mxu0 0.0
          %1471 = vmatprep.subr.mxu0 0.0
          %1472 = vmatpush1.msra.mxu0 0.0
          %1473 = vmatprep.subr.mxu0 0.0
          %1474 = vmatpush1.msra.mxu0 0.0
          %1475 = vmatprep.subr.mxu0 0.0
          %1476 = vmatpush1.msra.mxu0 0.0
          %1477 = vmatprep.subr.mxu0 0.0
          %1478 = vmatpush1.msra.mxu0 0.0
          %1479 = vmatprep.subr.mxu0 0.0
          %1480 = vmatpush1.msra.mxu0 0.0
          %1481 = vmatprep.subr.mxu0 0.0
          %1482 = vmatpush1.msra.mxu0 0.0
          %1483 = vmatprep.subr.mxu0 0.0
          %1484 = vmatpush1.msra.mxu0 0.0
          %1485 = vmatprep.subr.mxu0 0.0
          %1486 = vmatpush1.msra.mxu0 0.0
          %1487 = vmatprep.subr.mxu0 0.0
          %1488 = vmatpush1.msra.mxu0 0.0
          %1489 = vmatprep.subr.mxu0 0.0
          %1490 = vmatpush1.msra.mxu0 0.0
          %1491 = vmatprep.subr.mxu0 0.0
          %1492 = vmatpush1.msra.mxu0 0.0
          %1493 = vmatprep.mubr.f32.mxu0 0.0
          %1494 = vmatmul.mubr.f32.gmra.mrb[0].mxu0 %v1417
          %v1495 = vpop.f32.mrb[0].mxu0
          %v1496 = vadd.f32 0.0, %v1495
          %v1497 = vpop.f32.mrb[0].mxu0
          %v1498 = vadd.f32 0.0, %v1497
          %1499 = vdwg.mxu0
          %1500 = vmatprep.subr.mxu0 0.0
          %1501 = vmatpush1.msra.mxu0 %v1411
          %1502 = vmatprep.subr.mxu0 0.0
          %1503 = vmatpush1.msra.mxu0 %v1427
          %1504 = vmatprep.subr.mxu0 0.0
          %1505 = vmatpush1.msra.mxu0 0.0
          %1506 = vmatprep.subr.mxu0 0.0
          %1507 = vmatpush1.msra.mxu0 0.0
          %1508 = vmatprep.subr.mxu0 0.0
          %1509 = vmatpush1.msra.mxu0 0.0
          %1510 = vmatprep.subr.mxu0 0.0
          %1511 = vmatpush1.msra.mxu0 0.0
          %1512 = vmatprep.subr.mxu0 0.0
          %1513 = vmatpush1.msra.mxu0 0.0
          %1514 = vmatprep.subr.mxu0 0.0
          %1515 = vmatpush1.msra.mxu0 0.0
          %1516 = vmatprep.subr.mxu0 0.0
          %1517 = vmatpush1.msra.mxu0 0.0
          %1518 = vmatprep.subr.mxu0 0.0
          %1519 = vmatpush1.msra.mxu0 0.0
          %1520 = vmatprep.subr.mxu0 0.0
          %1521 = vmatpush1.msra.mxu0 0.0
          %1522 = vmatprep.subr.mxu0 0.0
          %1523 = vmatpush1.msra.mxu0 0.0
          %1524 = vmatprep.subr.mxu0 0.0
          %1525 = vmatpush1.msra.mxu0 0.0
          %1526 = vmatprep.subr.mxu0 0.0
          %1527 = vmatpush1.msra.mxu0 0.0
          %1528 = vmatprep.subr.mxu0 0.0
          %1529 = vmatpush1.msra.mxu0 0.0
          %1530 = vmatprep.subr.mxu0 0.0
          %1531 = vmatpush1.msra.mxu0 0.0
          %1532 = vmatprep.subr.mxu0 0.0
          %1533 = vmatpush1.msra.mxu0 0.0
          %1534 = vmatprep.subr.mxu0 0.0
          %1535 = vmatpush1.msra.mxu0 0.0
          %1536 = vmatprep.subr.mxu0 0.0
          %1537 = vmatpush1.msra.mxu0 0.0
          %1538 = vmatprep.subr.mxu0 0.0
          %1539 = vmatpush1.msra.mxu0 0.0
          %1540 = vmatprep.subr.mxu0 0.0
          %1541 = vmatpush1.msra.mxu0 0.0
          %1542 = vmatprep.subr.mxu0 0.0
          %1543 = vmatpush1.msra.mxu0 0.0
          %1544 = vmatprep.subr.mxu0 0.0
          %1545 = vmatpush1.msra.mxu0 0.0
          %1546 = vmatprep.subr.mxu0 0.0
          %1547 = vmatpush1.msra.mxu0 0.0
          %1548 = vmatprep.subr.mxu0 0.0
          %1549 = vmatpush1.msra.mxu0 0.0
          %1550 = vmatprep.subr.mxu0 0.0
          %1551 = vmatpush1.msra.mxu0 0.0
          %1552 = vmatprep.subr.mxu0 0.0
          %1553 = vmatpush1.msra.mxu0 0.0
          %1554 = vmatprep.subr.mxu0 0.0
          %1555 = vmatpush1.msra.mxu0 0.0
          %1556 = vmatprep.subr.mxu0 0.0
          %1557 = vmatpush1.msra.mxu0 0.0
          %1558 = vmatprep.subr.mxu0 0.0
          %1559 = vmatpush1.msra.mxu0 0.0
          %1560 = vmatprep.subr.mxu0 0.0
          %1561 = vmatpush1.msra.mxu0 0.0
          %1562 = vmatprep.subr.mxu0 0.0
          %1563 = vmatpush1.msra.mxu0 0.0
          %1564 = vmatprep.mubr.f32.mxu0 0.0
          %1565 = vmatmul.mubr.f32.gmra.mrb[0].mxu0 %v1417
          %v1566 = vpop.f32.mrb[0].mxu0
          %v1567 = vadd.f32 0.0, %v1566
          %v1568 = vpop.f32.mrb[0].mxu0
          %1569 = vdwg.mxu0
          %v1570 = vld [vmem:[%s7] sm:$0x7]
          %v1572 = vlaneseq
          %v1573 = vshrl.u32 %v1572, 7
          %v1574 = vsub.s32 0, %v1573
          %v1575 = vrot.slane %v1570, %v1574
          %v1576 = vlaneseq
          %v1577 = vshrl.u32 %v1576, 7
          %v1578 = vsub.s32 1, %v1577
          %v1579 = vrot.slane %v1570, %v1578
          %v1580 = vlaneseq
          %v1581 = vshrl.u32 %v1580, 7
          %v1582 = vsub.s32 2, %v1581
          %v1583 = vrot.slane %v1570, %v1582
          %v1587 = vsub.f32 %v1496, %v1575
          %v1588 = vsub.f32 %v1498, %v1579
          %v1589 = vsub.f32 %v1567, %v1583
          %v1590 = vmul.f32 %v1587, 0.0625
          %v1591 = vmul.f32 %v1588, 0.0625
          %v1592 = vmul.f32 %v1589, 0.0625
          %v1596 = vcombine.low %v1590, %v1591
          %v1598 = vunpack.c.l.s4 1966171168
          %v1599 = vunpack.c.0.s8 %v1598
          %v1600 = vlaneseq
          %v1601 = vshrl.u32 %v1600, 7
          %v1602 = vsub.s32 %v1599, %v1601
          %v1603 = vrot.slane %v1596, %v1602
          %v1605 = vunpack.c.l.s4 1966171168
          %v1606 = vunpack.c.0.s8 %v1605
          %v1607 = vlaneseq
          %v1608 = vshrl.u32 %v1607, 7
          %v1609 = vsub.s32 %v1606, %v1608
          %v1610 = vrot.slane %v1592, %v1609
          %v1611 = vcombine.low %v1603, %v1610
          %v1613 = vunpack.c.l.s4 1966171168
          %v1614 = vunpack.c.0.s8 %v1613
          %v1615 = vlaneseq
          %v1616 = vshrl.u32 %v1615, 7
          %v1617 = vsub.s32 %v1614, %v1616
          %v1618 = vrot.slane %v1611, %v1617
          %v1620 = vlaneseq
          %vm1621 = vcmp.ge.s32.totalorder %v1620, 0
          %vm1622 = vcmp.lt.s32.totalorder %v1620, 384
          %vm1623 = vmand %vm1621, %vm1622
          %1624 = vst.msk [vmem:[#allocation3] sm:$0x7] %vm1623, %v1618
        $region68: #{tpu_custom_call.1} parent=51 // pred_fallthru
          _
        // Predicated region
        $region69: #{tpu_custom_call.1} parent=51 // pred_check
          %p1625 = pneg %p1199
        $region70: #{tpu_custom_call.1} parent=51 // pred_check_branch
          %1627 = sbr.rel (%p1625) target = $region72
        $region71: #{tpu_custom_call.1} parent=51 // pred_region
          %v1628 = vld [vmem:[%s329] sm:$0x7]
          %v1629 = vld [vmem:[#allocation3] sm:$0x7]
          %v1630 = vmul.f32 %v1628, %v1629
          %v1631 = vlaneseq
          %vm1632 = vcmp.ge.s32.totalorder %v1631, 0
          %vm1633 = vcmp.lt.s32.totalorder %v1631, 384
          %vm1634 = vmand %vm1632, %vm1633
          %1635 = vst.msk [vmem:[%s325] sm:$0x7] %vm1634, %v1630
        $region72: #{tpu_custom_call.1} parent=51 // pred_fallthru
          _
        %s1636 = sand.u32 %s218, 1
        %s1637 = scalar_lea.sflag [#allocation6], %s1636
        %s1638 = sand.u32 %s218, 1
        %s1639 = smul.addr %s1638, 3
        %s1640 = scalar_lea.vmem [#allocation7], %s1639
        // Predicated region
        $region73: #{tpu_custom_call.1} parent=51 // pred_check
          %p1641 = pneg %p228
        $region74: #{tpu_custom_call.1} parent=51 // pred_check_branch
          %1643 = sbr.rel (%p1641) target = $region76
        $region75: #{tpu_custom_call.1} parent=51 // pred_region
          %s1644 = smul.u32 %s28, %s27
          %s1646 = ssub.s32 48, 48
          %1647 = vsyncadd %s1637, %s1646
          %s1648 = smul.addr %s1644, 3
          %s1649 = smul.addr %s1648, 16
          %s1650 = scalar_lea.hbm %s8, %s1649
          %s1652 = sshll.u32 %s1640, 4
          %s1653 = int_to_ptr.vmem [resolvable:$true] %s1652
          %1655 = dma.vmem_to_hbm [thread:$0]  %s1653, 48, %s1650, %s1637
        $region76: #{tpu_custom_call.1} parent=51 // pred_fallthru
          _
      $region52: #{tpu_custom_call.1} parent=5 // pred_fallthru
        _
      %p1656 = scmp.le.s32.totalorder 2, %s18
      // Predicated region
      $region77: #{tpu_custom_call.1} parent=5 // pred_check
        %p1657 = pneg %p1656
      $region78: #{tpu_custom_call.1} parent=5 // pred_check_branch
        %1659 = sbr.rel (%p1657) target = $region80
      $region79: #{tpu_custom_call.1} parent=5 // pred_region
        %s1660 = ssub.s32 %s18, 2
        // Predicated region
        $region81: #{tpu_custom_call.1} parent=79 // pred_check
          %p1661 = pneg %p234
        $region82: #{tpu_custom_call.1} parent=79 // pred_check_branch
          %1663 = sbr.rel (%p1661) target = $region84
        $region83: #{tpu_custom_call.1} parent=79 // pred_region
          %s1664 = sand.u32 %s219, 1
          %s1665 = scalar_lea.sflag [#allocation6], %s1664
          %s1666 = sand.u32 %s219, 1
          %s1667 = smul.addr %s1666, 3
          %s1668 = scalar_lea.vmem [#allocation7], %s1667
          %1669 = dma.done %s1665, 48
        $region84: #{tpu_custom_call.1} parent=79 // pred_fallthru
          _
      $region80: #{tpu_custom_call.1} parent=5 // pred_fallthru
        _
    $region6: #{tpu_custom_call.1} parent=1 // loop_footer
      %s22 = sadd.s32 1, %s18
    $region7: #{tpu_custom_call.1} parent=1 // loop_footer_branch
      %17 = sbr.rel target = $region3
    $region8: #{tpu_custom_call.1} parent=1 // loop_exit
      _
    %1670 = vsyncpa [#allocation5], 1
    %s1671 = scalar_lea.sflag [#allocation5], 1
    %1672 = vsyncpa %s1671, 1
    %1673 = vsyncpa [#allocation6], 1
    %s1674 = scalar_lea.sflag [#allocation6], 1
    %1675 = vsyncpa %s1674, 1

</llo_original>
